<compile_context>
chip_gen: v7x
topology: tpu7x:2x2x1
jax: 0.10.0
libtpu: 0.0.40
codegen_flags: <defaults>
</compile_context>

<pallas_src>
import functools

import jax
import jax.numpy as jnp
from jax import lax
from jax.experimental import pallas as pl
from jax.experimental.pallas import tpu as pltpu

EPS = 1e-5
NEG_SLOPE = 0.2


def _round_up(x, m):
    return (x + m - 1) // m * m


def _leaky_relu(h):
    return jnp.where(h > 0, h, NEG_SLOPE * h)


def _bn_train_ref(h, gamma, beta):
    """Reference BatchNorm1d (training mode): full-batch stats, biased var."""
    mu = jnp.mean(h, axis=0, keepdims=True)
    var = jnp.mean((h - mu) ** 2, axis=0, keepdims=True)
    return (h - mu) * lax.rsqrt(var + EPS) * gamma + beta


def _mlp_kernel(x_ref,
                w1_ref, g1_ref, be1_ref,
                w2_ref, g2_ref, be2_ref,
                w3_ref, b3_ref,
                o_ref,
                s1_ref, q1_ref, s2_ref, q2_ref,
                *, batch, tb):
    p = pl.program_id(0)   # phase: 0 = layer-1 stats, 1 = layer-2 stats, 2 = output
    i = pl.program_id(1)   # batch tile index
    inv_b = 1.0 / batch

    def linear1():
        # x is already bf16 (cast in the wrapper); f32 accumulation on the MXU.
        return jnp.dot(x_ref[...], w1_ref[...], preferred_element_type=jnp.float32)

    def bn(h, s_ref, q_ref, g_ref, be_ref):
        mu = s_ref[...] * inv_b
        var = jnp.maximum(q_ref[...] * inv_b - mu * mu, 0.0)
        rstd = lax.rsqrt(var + EPS)
        return (h - mu) * rstd * g_ref[...] + be_ref[...]

    # Zero the stat accumulators at the start of their accumulation phase.
    @pl.when((p == 0) & (i == 0))
    def _():
        s1_ref[...] = jnp.zeros_like(s1_ref)
        q1_ref[...] = jnp.zeros_like(q1_ref)

    @pl.when((p == 1) & (i == 0))
    def _():
        s2_ref[...] = jnp.zeros_like(s2_ref)
        q2_ref[...] = jnp.zeros_like(q2_ref)

    # Phase 0: accumulate sum / sum-of-squares of layer-1 pre-activations.
    @pl.when(p == 0)
    def _():
        h1 = linear1()
        # Padded batch rows of x are exact zeros and the layer-1 bias is
        # dropped (it cancels under BN), so padded rows contribute 0 here.
        s1_ref[...] += jnp.sum(h1, axis=0, keepdims=True)
        q1_ref[...] += jnp.sum(h1 * h1, axis=0, keepdims=True)
        o_ref[...] = jnp.zeros_like(o_ref)

    # Phase 1: layer-1 with global stats, accumulate layer-2 stats.
    @pl.when(p == 1)
    def _():
        a1 = _leaky_relu(bn(linear1(), s1_ref, q1_ref, g1_ref, be1_ref))
        h2 = jnp.dot(a1.astype(jnp.bfloat16), w2_ref[...],
                     preferred_element_type=jnp.float32)
        # After BN the padded rows are no longer zero -> mask them out.
        row = i * tb + lax.broadcasted_iota(jnp.int32, (tb, 1), 0)
        h2m = jnp.where(row < batch, h2, 0.0)
        s2_ref[...] += jnp.sum(h2m, axis=0, keepdims=True)
        q2_ref[...] += jnp.sum(h2m * h2m, axis=0, keepdims=True)
        o_ref[...] = jnp.zeros_like(o_ref)

    # Phase 2: full forward with both sets of global stats, write output.
    @pl.when(p == 2)
    def _():
        a1 = _leaky_relu(bn(linear1(), s1_ref, q1_ref, g1_ref, be1_ref))
        h2 = jnp.dot(a1.astype(jnp.bfloat16), w2_ref[...],
                     preferred_element_type=jnp.float32)
        a2 = _leaky_relu(bn(h2, s2_ref, q2_ref, g2_ref, be2_ref))
        # Linear(512 -> 1): VPU multiply + lane reduction (avoids a lane-sparse
        # N=1 MXU pass / masked partial stores).
        out = jnp.sum(a2 * w3_ref[...], axis=-1, keepdims=True) + b3_ref[...]
        o_ref[...] = out.astype(o_ref.dtype)


def mlp_512_forward(x, params, *, tb=1024):
    """x: (B, 192) float32.  Returns (B, 1) float32."""
    (w1, b1, g1, be1, w2, b2, g2, be2, w3, b3) = params
    del b1, b2  # exactly cancelled by training-mode BN; not sent to the kernel.
    B, C = x.shape
    H1 = w1.shape[1]
    H2 = w2.shape[1]

    TB = min(_round_up(tb, 16), _round_up(B, 16))   # bf16-friendly sublane tile
    B_pad = _round_up(B, TB)
    nt = B_pad // TB

    # bf16 MXU operands (weights + input activations); everything else f32.
    x_p = jnp.pad(x, ((0, B_pad - B), (0, 0))).astype(jnp.bfloat16)
    w1b = w1.astype(jnp.bfloat16)
    w2b = w2.astype(jnp.bfloat16)
    w3r = w3.reshape(1, H2).astype(jnp.float32)     # (1, 512) row for reduction
    b3r = b3.reshape(1, 1).astype(jnp.float32)

    kernel = functools.partial(_mlp_kernel, batch=B, tb=TB)
    const = lambda p, i: (0, 0)

    grid_spec = pltpu.PrefetchScalarGridSpec(
        num_scalar_prefetch=0,
        grid=(3, nt),                                   # (phase, batch tile)
        in_specs=[
            pl.BlockSpec((TB, C), lambda p, i: (i, 0)),  # x tile, re-read per phase
            pl.BlockSpec(w1b.shape, const),              # weights / BN params stay
            pl.BlockSpec(g1.shape, const),               # VMEM-resident (constant
            pl.BlockSpec(be1.shape, const),              # block index)
            pl.BlockSpec(w2b.shape, const),
            pl.BlockSpec(g2.shape, const),
            pl.BlockSpec(be2.shape, const),
            pl.BlockSpec(w3r.shape, const),
            pl.BlockSpec(b3r.shape, const),
        ],
        out_specs=pl.BlockSpec((TB, 1), lambda p, i: (i, 0)),
        scratch_shapes=[
            pltpu.VMEM((1, H1), jnp.float32),   # sum(h1)
            pltpu.VMEM((1, H1), jnp.float32),   # sum(h1^2)
            pltpu.VMEM((1, H2), jnp.float32),   # sum(h2)
            pltpu.VMEM((1, H2), jnp.float32),   # sum(h2^2)
        ],
    )

    out = pl.pallas_call(
        kernel,
        out_shape=jax.ShapeDtypeStruct((B_pad, 1), jnp.float32),
        grid_spec=grid_spec,
        compiler_params=pltpu.CompilerParams(
            # Both axes carry the running BN sums in scratch, so neither may be
            # megacore-parallel.  48 MiB scoped VMEM: above the v5e 16 MiB
            # default, below v7x's 64 MiB physical per TC.
            dimension_semantics=("arbitrary", "arbitrary"),
            vmem_limit_bytes=48 * 1024 * 1024,
        ),
    )(x_p, w1b, g1, be1, w2b, g2, be2, w3r, b3r)
    return out[:B]


def init_params(key, input_nc=192):
    """Mirror nn.Linear default init (U(-1/sqrt(fan_in), +)); BN gamma=1, beta=0.
    Linear weights stored as (in_features, out_features)."""
    dims = [(input_nc, 256), (256, 512), (512, 1)]
    keys = jax.random.split(key, 2 * len(dims))
    lin = []
    for i, (fin, fout) in enumerate(dims):
        bound = 1.0 / (fin ** 0.5)
        w = jax.random.uniform(keys[2 * i], (fin, fout), jnp.float32, -bound, bound)
        b = jax.random.uniform(keys[2 * i + 1], (1, fout), jnp.float32, -bound, bound)
        lin.append((w, b))
    (w1, b1), (w2, b2), (w3, b3) = lin
    g1, be1 = jnp.ones((1, 256), jnp.float32), jnp.zeros((1, 256), jnp.float32)
    g2, be2 = jnp.ones((1, 512), jnp.float32), jnp.zeros((1, 512), jnp.float32)
    return (w1, b1, g1, be1, w2, b2, g2, be2, w3, b3)


def reference_forward(x, params):
    """Pure-JAX reference with the module's semantics (biases included) and the
    same bf16-operand / f32-accumulate matmul precision policy as the kernel."""
    (w1, b1, g1, be1, w2, b2, g2, be2, w3, b3) = params
    h = jnp.dot(x.astype(jnp.bfloat16), w1.astype(jnp.bfloat16),
                preferred_element_type=jnp.float32) + b1
    h = _leaky_relu(_bn_train_ref(h, g1, be1))
    h = jnp.dot(h.astype(jnp.bfloat16), w2.astype(jnp.bfloat16),
                preferred_element_type=jnp.float32) + b2
    h = _leaky_relu(_bn_train_ref(h, g2, be2))
    return h @ w3 + b3


if __name__ == "__main__":
    key = jax.random.PRNGKey(0)
    k_x, k_p = jax.random.split(key)

    B, input_nc = 80, 192          # feature dim fixed by the module
    x = jax.random.normal(k_x, (B, input_nc), jnp.float32)
    params = init_params(k_p, input_nc=input_nc)

    # Small tile on purpose: exercises multi-tile BN-stat accumulation and the
    # zero-padded final tile (B=80 -> B_pad=96 with TB=32, grid=(3, 3)).
    out = mlp_512_forward(x, params, tb=32)
    out = jax.block_until_ready(out)

    ref = reference_forward(x, params)
    assert out.shape == (B, 1)
    assert jnp.allclose(out, ref, atol=5e-3, rtol=5e-3), (
        float(jnp.max(jnp.abs(out - ref))))

    print("KERNEL_OK")
</pallas_src>

<mosaic_0001>
module attributes {stable_mosaic.version = 11 : i64} {
  func.func @_mlp_kernel(%arg0: i32, %arg1: i32, %arg2: memref<32x192xbf16, #tpu.memory_space<vmem>>, %arg3: memref<192x256xbf16, #tpu.memory_space<vmem>>, %arg4: memref<1x256xf32, #tpu.memory_space<vmem>>, %arg5: memref<1x256xf32, #tpu.memory_space<vmem>>, %arg6: memref<256x512xbf16, #tpu.memory_space<vmem>>, %arg7: memref<1x512xf32, #tpu.memory_space<vmem>>, %arg8: memref<1x512xf32, #tpu.memory_space<vmem>>, %arg9: memref<1x512xf32, #tpu.memory_space<vmem>>, %arg10: memref<1x1xf32, #tpu.memory_space<vmem>>, %arg11: memref<32x1xf32, #tpu.memory_space<vmem>>, %arg12: memref<1x256xf32, #tpu.memory_space<vmem>>, %arg13: memref<1x256xf32, #tpu.memory_space<vmem>>, %arg14: memref<1x512xf32, #tpu.memory_space<vmem>>, %arg15: memref<1x512xf32, #tpu.memory_space<vmem>>) attributes {dimension_semantics = [#tpu.dimension_semantics<arbitrary>, #tpu.dimension_semantics<arbitrary>], iteration_bounds = array<i64: 3, 3>, scalar_prefetch = 0 : i64, scratch_operands = 4 : i64, tpu.core_type = #tpu.core_type<tc>, window_params = [{transform_indices = @transform_0, window_bounds = array<i64: 32, 192>}, {pipeline_mode = #tpu.pipeline_mode<synchronous>, transform_indices = @transform_1, window_bounds = array<i64: 192, 256>}, {pipeline_mode = #tpu.pipeline_mode<synchronous>, transform_indices = @transform_2, window_bounds = array<i64: 1, 256>}, {pipeline_mode = #tpu.pipeline_mode<synchronous>, transform_indices = @transform_3, window_bounds = array<i64: 1, 256>}, {pipeline_mode = #tpu.pipeline_mode<synchronous>, transform_indices = @transform_4, window_bounds = array<i64: 256, 512>}, {pipeline_mode = #tpu.pipeline_mode<synchronous>, transform_indices = @transform_5, window_bounds = array<i64: 1, 512>}, {pipeline_mode = #tpu.pipeline_mode<synchronous>, transform_indices = @transform_6, window_bounds = array<i64: 1, 512>}, {pipeline_mode = #tpu.pipeline_mode<synchronous>, transform_indices = @transform_7, window_bounds = array<i64: 1, 512>}, {pipeline_mode = #tpu.pipeline_mode<synchronous>, transform_indices = @transform_8, window_bounds = array<i64: 1, 1>}, {transform_indices = @transform_9, window_bounds = array<i64: 32, 1>}]} {
    %c0_i32 = arith.constant 0 : i32
    %0 = arith.cmpi eq, %arg0, %c0_i32 : i32
    %c0_i32_0 = arith.constant 0 : i32
    %1 = arith.cmpi eq, %arg1, %c0_i32_0 : i32
    %2 = arith.andi %0, %1 : i1
    %3 = arith.extui %2 : i1 to i32
    %c0_i32_1 = arith.constant 0 : i32
    %4 = arith.cmpi ne, %3, %c0_i32_1 : i32
    scf.if %4 {
      %cst = arith.constant 0.000000e+00 : f32
      %19 = vector.broadcast %cst : f32 to vector<1x256xf32>
      %c0 = arith.constant 0 : index
      %c0_9 = arith.constant 0 : index
      %20 = vector.load %arg12[%c0, %c0_9] : memref<1x256xf32, #tpu.memory_space<vmem>>, vector<1x256xf32>
      tpu.vector_store %arg12[%c0, %c0_9], %19 {strides = array<i32>} : memref<1x256xf32, #tpu.memory_space<vmem>>, vector<1x256xf32>,
      %cst_10 = arith.constant 0.000000e+00 : f32
      %21 = vector.broadcast %cst_10 : f32 to vector<1x256xf32>
      %c0_11 = arith.constant 0 : index
      %c0_12 = arith.constant 0 : index
      %22 = vector.load %arg13[%c0_11, %c0_12] : memref<1x256xf32, #tpu.memory_space<vmem>>, vector<1x256xf32>
      tpu.vector_store %arg13[%c0_11, %c0_12], %21 {strides = array<i32>} : memref<1x256xf32, #tpu.memory_space<vmem>>, vector<1x256xf32>,
    } else {
    }
    %c1_i32 = arith.constant 1 : i32
    %5 = arith.cmpi eq, %arg0, %c1_i32 : i32
    %c0_i32_2 = arith.constant 0 : i32
    %6 = arith.cmpi eq, %arg1, %c0_i32_2 : i32
    %7 = arith.andi %5, %6 : i1
    %8 = arith.extui %7 : i1 to i32
    %c0_i32_3 = arith.constant 0 : i32
    %9 = arith.cmpi ne, %8, %c0_i32_3 : i32
    scf.if %9 {
      %cst = arith.constant 0.000000e+00 : f32
      %19 = vector.broadcast %cst : f32 to vector<1x512xf32>
      %c0 = arith.constant 0 : index
      %c0_9 = arith.constant 0 : index
      %20 = vector.load %arg14[%c0, %c0_9] : memref<1x512xf32, #tpu.memory_space<vmem>>, vector<1x512xf32>
      tpu.vector_store %arg14[%c0, %c0_9], %19 {strides = array<i32>} : memref<1x512xf32, #tpu.memory_space<vmem>>, vector<1x512xf32>,
      %cst_10 = arith.constant 0.000000e+00 : f32
      %21 = vector.broadcast %cst_10 : f32 to vector<1x512xf32>
      %c0_11 = arith.constant 0 : index
      %c0_12 = arith.constant 0 : index
      %22 = vector.load %arg15[%c0_11, %c0_12] : memref<1x512xf32, #tpu.memory_space<vmem>>, vector<1x512xf32>
      tpu.vector_store %arg15[%c0_11, %c0_12], %21 {strides = array<i32>} : memref<1x512xf32, #tpu.memory_space<vmem>>, vector<1x512xf32>,
    } else {
    }
    %c0_i32_4 = arith.constant 0 : i32
    %10 = arith.cmpi eq, %arg0, %c0_i32_4 : i32
    %11 = arith.extui %10 : i1 to i32
    %c0_i32_5 = arith.constant 0 : i32
    %12 = arith.cmpi ne, %11, %c0_i32_5 : i32
    scf.if %12 {
      %c0 = arith.constant 0 : index
      %c0_9 = arith.constant 0 : index
      %19 = vector.load %arg2[%c0, %c0_9] : memref<32x192xbf16, #tpu.memory_space<vmem>>, vector<32x192xbf16>
      %c0_10 = arith.constant 0 : index
      %c0_11 = arith.constant 0 : index
      %20 = vector.load %arg3[%c0_10, %c0_11] : memref<192x256xbf16, #tpu.memory_space<vmem>>, vector<192x256xbf16>
      %cst = arith.constant dense<0.000000e+00> : vector<32x256xf32>
      %21 = tpu.matmul %19, %20, %cst {dimension_numbers = #tpu.dot_dimension_numbers<[1], [0], [0], [1], [0, 0, 1, 1], [], []>} : vector<32x192xbf16>, vector<192x256xbf16>, vector<32x256xf32> -> vector<32x256xf32>
      %c0_12 = arith.constant 0 : index
      %c0_13 = arith.constant 0 : index
      %22 = vector.load %arg12[%c0_12, %c0_13] : memref<1x256xf32, #tpu.memory_space<vmem>>, vector<1x256xf32>
      %cst_14 = arith.constant dense<0.000000e+00> : vector<256xf32>
      %23 = vector.multi_reduction <add>, %21, %cst_14 [0] : vector<32x256xf32> to vector<256xf32>
      %24 = vector.shape_cast %23 : vector<256xf32> to vector<1x256xf32>
      %25 = arith.addf %22, %24 : vector<1x256xf32>
      %c0_15 = arith.constant 0 : index
      %c0_16 = arith.constant 0 : index
      %26 = vector.load %arg12[%c0_15, %c0_16] : memref<1x256xf32, #tpu.memory_space<vmem>>, vector<1x256xf32>
      tpu.vector_store %arg12[%c0_15, %c0_16], %25 {strides = array<i32>} : memref<1x256xf32, #tpu.memory_space<vmem>>, vector<1x256xf32>,
      %c0_17 = arith.constant 0 : index
      %c0_18 = arith.constant 0 : index
      %27 = vector.load %arg13[%c0_17, %c0_18] : memref<1x256xf32, #tpu.memory_space<vmem>>, vector<1x256xf32>
      %28 = arith.mulf %21, %21 : vector<32x256xf32>
      %cst_19 = arith.constant dense<0.000000e+00> : vector<256xf32>
      %29 = vector.multi_reduction <add>, %28, %cst_19 [0] : vector<32x256xf32> to vector<256xf32>
      %30 = vector.shape_cast %29 : vector<256xf32> to vector<1x256xf32>
      %31 = arith.addf %27, %30 : vector<1x256xf32>
      %c0_20 = arith.constant 0 : index
      %c0_21 = arith.constant 0 : index
      %32 = vector.load %arg13[%c0_20, %c0_21] : memref<1x256xf32, #tpu.memory_space<vmem>>, vector<1x256xf32>
      tpu.vector_store %arg13[%c0_20, %c0_21], %31 {strides = array<i32>} : memref<1x256xf32, #tpu.memory_space<vmem>>, vector<1x256xf32>,
      %cst_22 = arith.constant 0.000000e+00 : f32
      %33 = vector.broadcast %cst_22 : f32 to vector<32x1xf32>
      %c0_23 = arith.constant 0 : index
      %c0_24 = arith.constant 0 : index
      %34 = vector.load %arg11[%c0_23, %c0_24] : memref<32x1xf32, #tpu.memory_space<vmem>>, vector<32x1xf32>
      tpu.vector_store %arg11[%c0_23, %c0_24], %33 {strides = array<i32>} : memref<32x1xf32, #tpu.memory_space<vmem>>, vector<32x1xf32>,
    } else {
    }
    %c1_i32_6 = arith.constant 1 : i32
    %13 = arith.cmpi eq, %arg0, %c1_i32_6 : i32
    %14 = arith.extui %13 : i1 to i32
    %c0_i32_7 = arith.constant 0 : i32
    %15 = arith.cmpi ne, %14, %c0_i32_7 : i32
    scf.if %15 {
      %c0 = arith.constant 0 : index
      %c0_9 = arith.constant 0 : index
      %19 = vector.load %arg2[%c0, %c0_9] : memref<32x192xbf16, #tpu.memory_space<vmem>>, vector<32x192xbf16>
      %c0_10 = arith.constant 0 : index
      %c0_11 = arith.constant 0 : index
      %20 = vector.load %arg3[%c0_10, %c0_11] : memref<192x256xbf16, #tpu.memory_space<vmem>>, vector<192x256xbf16>
      %cst = arith.constant dense<0.000000e+00> : vector<32x256xf32>
      %21 = tpu.matmul %19, %20, %cst {dimension_numbers = #tpu.dot_dimension_numbers<[1], [0], [0], [1], [0, 0, 1, 1], [], []>} : vector<32x192xbf16>, vector<192x256xbf16>, vector<32x256xf32> -> vector<32x256xf32>
      %c0_12 = arith.constant 0 : index
      %c0_13 = arith.constant 0 : index
      %22 = vector.load %arg12[%c0_12, %c0_13] : memref<1x256xf32, #tpu.memory_space<vmem>>, vector<1x256xf32>
      %cst_14 = arith.constant 1.250000e-02 : f32
      %23 = vector.broadcast %cst_14 : f32 to vector<1x256xf32>
      %24 = arith.mulf %22, %23 : vector<1x256xf32>
      %c0_15 = arith.constant 0 : index
      %c0_16 = arith.constant 0 : index
      %25 = vector.load %arg13[%c0_15, %c0_16] : memref<1x256xf32, #tpu.memory_space<vmem>>, vector<1x256xf32>
      %cst_17 = arith.constant 1.250000e-02 : f32
      %26 = vector.broadcast %cst_17 : f32 to vector<1x256xf32>
      %27 = arith.mulf %25, %26 : vector<1x256xf32>
      %28 = arith.mulf %24, %24 : vector<1x256xf32>
      %29 = arith.subf %27, %28 : vector<1x256xf32>
      %cst_18 = arith.constant 0.000000e+00 : f32
      %30 = vector.broadcast %cst_18 : f32 to vector<1x256xf32>
      %31 = arith.maximumf %29, %30 : vector<1x256xf32>
      %cst_19 = arith.constant 9.99999974E-6 : f32
      %32 = vector.broadcast %cst_19 : f32 to vector<1x256xf32>
      %33 = arith.addf %31, %32 : vector<1x256xf32>
      %34 = math.rsqrt %33 : vector<1x256xf32>
      %35 = vector.broadcast %24 : vector<1x256xf32> to vector<32x256xf32>
      %36 = arith.subf %21, %35 : vector<32x256xf32>
      %37 = vector.broadcast %34 : vector<1x256xf32> to vector<32x256xf32>
      %38 = arith.mulf %36, %37 : vector<32x256xf32>
      %c0_20 = arith.constant 0 : index
      %c0_21 = arith.constant 0 : index
      %39 = vector.load %arg4[%c0_20, %c0_21] : memref<1x256xf32, #tpu.memory_space<vmem>>, vector<1x256xf32>
      %40 = vector.broadcast %39 : vector<1x256xf32> to vector<32x256xf32>
      %41 = arith.mulf %38, %40 : vector<32x256xf32>
      %c0_22 = arith.constant 0 : index
      %c0_23 = arith.constant 0 : index
      %42 = vector.load %arg5[%c0_22, %c0_23] : memref<1x256xf32, #tpu.memory_space<vmem>>, vector<1x256xf32>
      %43 = vector.broadcast %42 : vector<1x256xf32> to vector<32x256xf32>
      %44 = arith.addf %41, %43 : vector<32x256xf32>
      %cst_24 = arith.constant 0.000000e+00 : f32
      %45 = vector.broadcast %cst_24 : f32 to vector<32x256xf32>
      %46 = arith.cmpf ogt, %44, %45 : vector<32x256xf32>
      %cst_25 = arith.constant 2.000000e-01 : f32
      %47 = vector.broadcast %cst_25 : f32 to vector<32x256xf32>
      %48 = arith.mulf %47, %44 : vector<32x256xf32>
      %49 = arith.select %46, %44, %48 : vector<32x256xi1>, vector<32x256xf32>
      %50 = arith.truncf %49 : vector<32x256xf32> to vector<32x256xbf16>
      %c0_26 = arith.constant 0 : index
      %c0_27 = arith.constant 0 : index
      %51 = vector.load %arg6[%c0_26, %c0_27] : memref<256x512xbf16, #tpu.memory_space<vmem>>, vector<256x512xbf16>
      %cst_28 = arith.constant dense<0.000000e+00> : vector<32x512xf32>
      %52 = tpu.matmul %50, %51, %cst_28 {dimension_numbers = #tpu.dot_dimension_numbers<[1], [0], [0], [1], [0, 0, 1, 1], [], []>} : vector<32x256xbf16>, vector<256x512xbf16>, vector<32x512xf32> -> vector<32x512xf32>
      %c32_i32 = arith.constant 32 : i32
      %53 = arith.muli %arg1, %c32_i32 : i32
      %54 = tpu.iota {dimensions = array<i32: 0>} : vector<32x1xi32>
      %55 = vector.broadcast %53 : i32 to vector<32x1xi32>
      %56 = arith.addi %55, %54 : vector<32x1xi32>
      %c80_i32 = arith.constant 80 : i32
      %57 = vector.broadcast %c80_i32 : i32 to vector<32x1xi32>
      %58 = arith.cmpi slt, %56, %57 : vector<32x1xi32>
      %cst_29 = arith.constant 0.000000e+00 : f32
      %59 = vector.shape_cast %58 : vector<32x1xi1> to vector<32x1xi1>
      %60 = vector.broadcast %59 : vector<32x1xi1> to vector<32x512xi1>
      %61 = vector.broadcast %cst_29 : f32 to vector<32x512xf32>
      %62 = arith.select %60, %52, %61 : vector<32x512xi1>, vector<32x512xf32>
      %c0_30 = arith.constant 0 : index
      %c0_31 = arith.constant 0 : index
      %63 = vector.load %arg14[%c0_30, %c0_31] : memref<1x512xf32, #tpu.memory_space<vmem>>, vector<1x512xf32>
      %cst_32 = arith.constant dense<0.000000e+00> : vector<512xf32>
      %64 = vector.multi_reduction <add>, %62, %cst_32 [0] : vector<32x512xf32> to vector<512xf32>
      %65 = vector.shape_cast %64 : vector<512xf32> to vector<1x512xf32>
      %66 = arith.addf %63, %65 : vector<1x512xf32>
      %c0_33 = arith.constant 0 : index
      %c0_34 = arith.constant 0 : index
      %67 = vector.load %arg14[%c0_33, %c0_34] : memref<1x512xf32, #tpu.memory_space<vmem>>, vector<1x512xf32>
      tpu.vector_store %arg14[%c0_33, %c0_34], %66 {strides = array<i32>} : memref<1x512xf32, #tpu.memory_space<vmem>>, vector<1x512xf32>,
      %c0_35 = arith.constant 0 : index
      %c0_36 = arith.constant 0 : index
      %68 = vector.load %arg15[%c0_35, %c0_36] : memref<1x512xf32, #tpu.memory_space<vmem>>, vector<1x512xf32>
      %69 = arith.mulf %62, %62 : vector<32x512xf32>
      %cst_37 = arith.constant dense<0.000000e+00> : vector<512xf32>
      %70 = vector.multi_reduction <add>, %69, %cst_37 [0] : vector<32x512xf32> to vector<512xf32>
      %71 = vector.shape_cast %70 : vector<512xf32> to vector<1x512xf32>
      %72 = arith.addf %68, %71 : vector<1x512xf32>
      %c0_38 = arith.constant 0 : index
      %c0_39 = arith.constant 0 : index
      %73 = vector.load %arg15[%c0_38, %c0_39] : memref<1x512xf32, #tpu.memory_space<vmem>>, vector<1x512xf32>
      tpu.vector_store %arg15[%c0_38, %c0_39], %72 {strides = array<i32>} : memref<1x512xf32, #tpu.memory_space<vmem>>, vector<1x512xf32>,
      %cst_40 = arith.constant 0.000000e+00 : f32
      %74 = vector.broadcast %cst_40 : f32 to vector<32x1xf32>
      %c0_41 = arith.constant 0 : index
      %c0_42 = arith.constant 0 : index
      %75 = vector.load %arg11[%c0_41, %c0_42] : memref<32x1xf32, #tpu.memory_space<vmem>>, vector<32x1xf32>
      tpu.vector_store %arg11[%c0_41, %c0_42], %74 {strides = array<i32>} : memref<32x1xf32, #tpu.memory_space<vmem>>, vector<32x1xf32>,
    } else {
    }
    %c2_i32 = arith.constant 2 : i32
    %16 = arith.cmpi eq, %arg0, %c2_i32 : i32
    %17 = arith.extui %16 : i1 to i32
    %c0_i32_8 = arith.constant 0 : i32
    %18 = arith.cmpi ne, %17, %c0_i32_8 : i32
    scf.if %18 {
      %c0 = arith.constant 0 : index
      %c0_9 = arith.constant 0 : index
      %19 = vector.load %arg2[%c0, %c0_9] : memref<32x192xbf16, #tpu.memory_space<vmem>>, vector<32x192xbf16>
      %c0_10 = arith.constant 0 : index
      %c0_11 = arith.constant 0 : index
      %20 = vector.load %arg3[%c0_10, %c0_11] : memref<192x256xbf16, #tpu.memory_space<vmem>>, vector<192x256xbf16>
      %cst = arith.constant dense<0.000000e+00> : vector<32x256xf32>
      %21 = tpu.matmul %19, %20, %cst {dimension_numbers = #tpu.dot_dimension_numbers<[1], [0], [0], [1], [0, 0, 1, 1], [], []>} : vector<32x192xbf16>, vector<192x256xbf16>, vector<32x256xf32> -> vector<32x256xf32>
      %c0_12 = arith.constant 0 : index
      %c0_13 = arith.constant 0 : index
      %22 = vector.load %arg12[%c0_12, %c0_13] : memref<1x256xf32, #tpu.memory_space<vmem>>, vector<1x256xf32>
      %cst_14 = arith.constant 1.250000e-02 : f32
      %23 = vector.broadcast %cst_14 : f32 to vector<1x256xf32>
      %24 = arith.mulf %22, %23 : vector<1x256xf32>
      %c0_15 = arith.constant 0 : index
      %c0_16 = arith.constant 0 : index
      %25 = vector.load %arg13[%c0_15, %c0_16] : memref<1x256xf32, #tpu.memory_space<vmem>>, vector<1x256xf32>
      %cst_17 = arith.constant 1.250000e-02 : f32
      %26 = vector.broadcast %cst_17 : f32 to vector<1x256xf32>
      %27 = arith.mulf %25, %26 : vector<1x256xf32>
      %28 = arith.mulf %24, %24 : vector<1x256xf32>
      %29 = arith.subf %27, %28 : vector<1x256xf32>
      %cst_18 = arith.constant 0.000000e+00 : f32
      %30 = vector.broadcast %cst_18 : f32 to vector<1x256xf32>
      %31 = arith.maximumf %29, %30 : vector<1x256xf32>
      %cst_19 = arith.constant 9.99999974E-6 : f32
      %32 = vector.broadcast %cst_19 : f32 to vector<1x256xf32>
      %33 = arith.addf %31, %32 : vector<1x256xf32>
      %34 = math.rsqrt %33 : vector<1x256xf32>
      %35 = vector.broadcast %24 : vector<1x256xf32> to vector<32x256xf32>
      %36 = arith.subf %21, %35 : vector<32x256xf32>
      %37 = vector.broadcast %34 : vector<1x256xf32> to vector<32x256xf32>
      %38 = arith.mulf %36, %37 : vector<32x256xf32>
      %c0_20 = arith.constant 0 : index
      %c0_21 = arith.constant 0 : index
      %39 = vector.load %arg4[%c0_20, %c0_21] : memref<1x256xf32, #tpu.memory_space<vmem>>, vector<1x256xf32>
      %40 = vector.broadcast %39 : vector<1x256xf32> to vector<32x256xf32>
      %41 = arith.mulf %38, %40 : vector<32x256xf32>
      %c0_22 = arith.constant 0 : index
      %c0_23 = arith.constant 0 : index
      %42 = vector.load %arg5[%c0_22, %c0_23] : memref<1x256xf32, #tpu.memory_space<vmem>>, vector<1x256xf32>
      %43 = vector.broadcast %42 : vector<1x256xf32> to vector<32x256xf32>
      %44 = arith.addf %41, %43 : vector<32x256xf32>
      %cst_24 = arith.constant 0.000000e+00 : f32
      %45 = vector.broadcast %cst_24 : f32 to vector<32x256xf32>
      %46 = arith.cmpf ogt, %44, %45 : vector<32x256xf32>
      %cst_25 = arith.constant 2.000000e-01 : f32
      %47 = vector.broadcast %cst_25 : f32 to vector<32x256xf32>
      %48 = arith.mulf %47, %44 : vector<32x256xf32>
      %49 = arith.select %46, %44, %48 : vector<32x256xi1>, vector<32x256xf32>
      %50 = arith.truncf %49 : vector<32x256xf32> to vector<32x256xbf16>
      %c0_26 = arith.constant 0 : index
      %c0_27 = arith.constant 0 : index
      %51 = vector.load %arg6[%c0_26, %c0_27] : memref<256x512xbf16, #tpu.memory_space<vmem>>, vector<256x512xbf16>
      %cst_28 = arith.constant dense<0.000000e+00> : vector<32x512xf32>
      %52 = tpu.matmul %50, %51, %cst_28 {dimension_numbers = #tpu.dot_dimension_numbers<[1], [0], [0], [1], [0, 0, 1, 1], [], []>} : vector<32x256xbf16>, vector<256x512xbf16>, vector<32x512xf32> -> vector<32x512xf32>
      %c0_29 = arith.constant 0 : index
      %c0_30 = arith.constant 0 : index
      %53 = vector.load %arg14[%c0_29, %c0_30] : memref<1x512xf32, #tpu.memory_space<vmem>>, vector<1x512xf32>
      %cst_31 = arith.constant 1.250000e-02 : f32
      %54 = vector.broadcast %cst_31 : f32 to vector<1x512xf32>
      %55 = arith.mulf %53, %54 : vector<1x512xf32>
      %c0_32 = arith.constant 0 : index
      %c0_33 = arith.constant 0 : index
      %56 = vector.load %arg15[%c0_32, %c0_33] : memref<1x512xf32, #tpu.memory_space<vmem>>, vector<1x512xf32>
      %cst_34 = arith.constant 1.250000e-02 : f32
      %57 = vector.broadcast %cst_34 : f32 to vector<1x512xf32>
      %58 = arith.mulf %56, %57 : vector<1x512xf32>
      %59 = arith.mulf %55, %55 : vector<1x512xf32>
      %60 = arith.subf %58, %59 : vector<1x512xf32>
      %cst_35 = arith.constant 0.000000e+00 : f32
      %61 = vector.broadcast %cst_35 : f32 to vector<1x512xf32>
      %62 = arith.maximumf %60, %61 : vector<1x512xf32>
      %cst_36 = arith.constant 9.99999974E-6 : f32
      %63 = vector.broadcast %cst_36 : f32 to vector<1x512xf32>
      %64 = arith.addf %62, %63 : vector<1x512xf32>
      %65 = math.rsqrt %64 : vector<1x512xf32>
      %66 = vector.broadcast %55 : vector<1x512xf32> to vector<32x512xf32>
      %67 = arith.subf %52, %66 : vector<32x512xf32>
      %68 = vector.broadcast %65 : vector<1x512xf32> to vector<32x512xf32>
      %69 = arith.mulf %67, %68 : vector<32x512xf32>
      %c0_37 = arith.constant 0 : index
      %c0_38 = arith.constant 0 : index
      %70 = vector.load %arg7[%c0_37, %c0_38] : memref<1x512xf32, #tpu.memory_space<vmem>>, vector<1x512xf32>
      %71 = vector.broadcast %70 : vector<1x512xf32> to vector<32x512xf32>
      %72 = arith.mulf %69, %71 : vector<32x512xf32>
      %c0_39 = arith.constant 0 : index
      %c0_40 = arith.constant 0 : index
      %73 = vector.load %arg8[%c0_39, %c0_40] : memref<1x512xf32, #tpu.memory_space<vmem>>, vector<1x512xf32>
      %74 = vector.broadcast %73 : vector<1x512xf32> to vector<32x512xf32>
      %75 = arith.addf %72, %74 : vector<32x512xf32>
      %cst_41 = arith.constant 0.000000e+00 : f32
      %76 = vector.broadcast %cst_41 : f32 to vector<32x512xf32>
      %77 = arith.cmpf ogt, %75, %76 : vector<32x512xf32>
      %cst_42 = arith.constant 2.000000e-01 : f32
      %78 = vector.broadcast %cst_42 : f32 to vector<32x512xf32>
      %79 = arith.mulf %78, %75 : vector<32x512xf32>
      %80 = arith.select %77, %75, %79 : vector<32x512xi1>, vector<32x512xf32>
      %c0_43 = arith.constant 0 : index
      %c0_44 = arith.constant 0 : index
      %81 = vector.load %arg9[%c0_43, %c0_44] : memref<1x512xf32, #tpu.memory_space<vmem>>, vector<1x512xf32>
      %82 = vector.broadcast %81 : vector<1x512xf32> to vector<32x512xf32>
      %83 = arith.mulf %80, %82 : vector<32x512xf32>
      %cst_45 = arith.constant dense<0.000000e+00> : vector<32xf32>
      %84 = vector.multi_reduction <add>, %83, %cst_45 [1] : vector<32x512xf32> to vector<32xf32>
      %85 = vector.shape_cast %84 : vector<32xf32> to vector<32x1xf32>
      %c0_46 = arith.constant 0 : index
      %c0_47 = arith.constant 0 : index
      %86 = vector.load %arg10[%c0_46, %c0_47] : memref<1x1xf32, #tpu.memory_space<vmem>>, vector<1x1xf32>
      %87 = vector.broadcast %86 : vector<1x1xf32> to vector<32x1xf32>
      %88 = arith.addf %85, %87 : vector<32x1xf32>
      %c0_48 = arith.constant 0 : index
      %c0_49 = arith.constant 0 : index
      %89 = vector.load %arg11[%c0_48, %c0_49] : memref<32x1xf32, #tpu.memory_space<vmem>>, vector<32x1xf32>
      tpu.vector_store %arg11[%c0_48, %c0_49], %88 {strides = array<i32>} : memref<32x1xf32, #tpu.memory_space<vmem>>, vector<32x1xf32>,
    } else {
    }
    return
  }
  func.func @transform_0(%arg0: i32, %arg1: i32) -> (i32, i32) {
    %c0_i32 = arith.constant 0 : i32
    %c0_i32_0 = arith.constant 0 : i32
    return %arg1, %c0_i32 : i32, i32
  }
  func.func @transform_1(%arg0: i32, %arg1: i32) -> (i32, i32) {
    %c0_i32 = arith.constant 0 : i32
    %c0_i32_0 = arith.constant 0 : i32
    %c0_i32_1 = arith.constant 0 : i32
    return %c0_i32, %c0_i32_0 : i32, i32
  }
  func.func @transform_2(%arg0: i32, %arg1: i32) -> (i32, i32) {
    %c0_i32 = arith.constant 0 : i32
    %c0_i32_0 = arith.constant 0 : i32
    %c0_i32_1 = arith.constant 0 : i32
    return %c0_i32, %c0_i32_0 : i32, i32
  }
  func.func @transform_3(%arg0: i32, %arg1: i32) -> (i32, i32) {
    %c0_i32 = arith.constant 0 : i32
    %c0_i32_0 = arith.constant 0 : i32
    %c0_i32_1 = arith.constant 0 : i32
    return %c0_i32, %c0_i32_0 : i32, i32
  }
  func.func @transform_4(%arg0: i32, %arg1: i32) -> (i32, i32) {
    %c0_i32 = arith.constant 0 : i32
    %c0_i32_0 = arith.constant 0 : i32
    %c0_i32_1 = arith.constant 0 : i32
    return %c0_i32, %c0_i32_0 : i32, i32
  }
  func.func @transform_5(%arg0: i32, %arg1: i32) -> (i32, i32) {
    %c0_i32 = arith.constant 0 : i32
    %c0_i32_0 = arith.constant 0 : i32
    %c0_i32_1 = arith.constant 0 : i32
    return %c0_i32, %c0_i32_0 : i32, i32
  }
  func.func @transform_6(%arg0: i32, %arg1: i32) -> (i32, i32) {
    %c0_i32 = arith.constant 0 : i32
    %c0_i32_0 = arith.constant 0 : i32
    %c0_i32_1 = arith.constant 0 : i32
    return %c0_i32, %c0_i32_0 : i32, i32
  }
  func.func @transform_7(%arg0: i32, %arg1: i32) -> (i32, i32) {
    %c0_i32 = arith.constant 0 : i32
    %c0_i32_0 = arith.constant 0 : i32
    %c0_i32_1 = arith.constant 0 : i32
    return %c0_i32, %c0_i32_0 : i32, i32
  }
  func.func @transform_8(%arg0: i32, %arg1: i32) -> (i32, i32) {
    %c0_i32 = arith.constant 0 : i32
    %c0_i32_0 = arith.constant 0 : i32
    %c0_i32_1 = arith.constant 0 : i32
    return %c0_i32, %c0_i32_0 : i32, i32
  }
  func.func @transform_9(%arg0: i32, %arg1: i32) -> (i32, i32) {
    %c0_i32 = arith.constant 0 : i32
    %c0_i32_0 = arith.constant 0 : i32
    return %arg1, %c0_i32 : i32, i32
  }
}

</mosaic_0001>

<llo_original>
// kernel: tpu_custom_call.1
$region0: #{tpu_custom_call.1}
  #allocation0 [shape = 'u32[]', space=smem, size = 0x4, offset = 0x4, fixed_abs, tag = 'smem constant byte address 0x4 - core index']
  #allocation1 [shape = 'u32[144,128]{1,0:T(1,128)}', space=vmem, size = 0x12000, scoped, tag = 'internal scratch']
  #allocation2 [shape = 'f32[1,256]{1,0:T(1,128)}', space=vmem, size = 0x400, scoped, tag = 'scratch operand']
  #allocation3 [shape = 'f32[1,256]{1,0:T(1,128)}', space=vmem, size = 0x400, scoped, tag = 'scratch operand']
  #allocation4 [shape = 'f32[1,512]{1,0:T(1,128)}', space=vmem, size = 0x800, scoped, tag = 'scratch operand']
  #allocation5 [shape = 'f32[1,512]{1,0:T(1,128)}', space=vmem, size = 0x800, scoped, tag = 'scratch operand']
  #allocation6 [shape = 'f32[1,1]{1,0:T(1,128)S(1)}', space=vmem, size = 0x200, scoped, tag = 'scoped memory for tpu_custom_call.1']
  %s0 = inlined_call_operand.hbm [shape: bf16[96,192], index: 0, kind: input, shape index: {}]
  %s1 = inlined_call_operand.hbm [shape: bf16[192,256], index: 1, kind: input, shape index: {}]
  %s2 = inlined_call_operand.vmem [shape: f32[1,256], index: 2, kind: input, shape index: {}]
  %s3 = inlined_call_operand.hbm [shape: f32[1,256], index: 3, kind: input, shape index: {}]
  %s4 = inlined_call_operand.hbm [shape: bf16[256,512], index: 4, kind: input, shape index: {}]
  %s5 = inlined_call_operand.vmem [shape: f32[1,512], index: 5, kind: input, shape index: {}]
  %s6 = inlined_call_operand.vmem [shape: f32[1,512], index: 6, kind: input, shape index: {}]
  %s7 = inlined_call_operand.vmem [shape: f32[1,512], index: 7, kind: input, shape index: {}]
  %s8 = inlined_call_operand.<no memory space> [shape: f32[1,1], index: 8, kind: input, shape index: {}]
  %s9 = inlined_call_operand.vmem [shape: f32[96,1], index: 9, kind: output, shape index: {}]
  %s10 = sld [smem:[#allocation0]]
  $region105: #{tpu_custom_call.1} parent=0
    _
  %s12 = ssub.s32 1, %s10
  %s13 = scalar_select 0, %s12, %s10
  %v14 = vstv %s8
  %15 = vst [vmem:[#allocation6] sm:$0x1] %v14
  $region1: #{tpu_custom_call.1} parent=0
    #allocation7 [shape = 'u8[32768]{0}', space=vmem, size = 0x8000, scoped, tag = 'input window, operand 0']
    #allocation8 [shape = 's32[2]{0}', space=sflag, size = 0x8, scoped, tag = 'scoped memory for tpu_custom_call.1']
    #allocation9 [shape = 'u8[98304]{0}', space=vmem, size = 0x18000, scoped, tag = 'input window, operand 1, single buffered']
    #allocation10 [shape = 's32[1]{0}', space=sflag, size = 0x4, scoped, tag = 'scoped memory for tpu_custom_call.1']
    #allocation11 [shape = 'u8[1024]{0}', space=vmem, size = 0x400, scoped, tag = 'input window, operand 3, single buffered']
    #allocation12 [shape = 'u8[262144]{0}', space=vmem, size = 0x40000, scoped, tag = 'input window, operand 4, single buffered']
    #allocation13 [shape = 's32[1]{0}', space=sflag, size = 0x4, scoped, tag = 'scoped memory for tpu_custom_call.1']
    %16 = vsyncpa [#allocation8], 0
    %s17 = scalar_lea.sflag [#allocation8], 1
    %18 = vsyncpa %s17, 0
    %19 = vsyncpa [#allocation10], 0
    %20 = vsyncpa [#allocation13], 0
    loop: start=0, step=1, limit=11
    $region2: #{tpu_custom_call.1} parent=1 // loop_pre_header
      _
    $region3: #{tpu_custom_call.1} parent=1 // loop_header
      %s22 = sphi 0, %s26
      %p23 = scmp.ge.s32.totalorder %s22, 11
      %s29 = sphi 0, %s41
      %s30 = sphi 0, %s37
      %s31 = sphi 0, %s29
      %s32 = sphi 0, %s30
      %s33 = sphi 0, %s31
      %s34 = sphi 0, %s32
      %s44 = sphi 0, %s46
      %s47 = sphi 0, %s44
      %s48 = sphi 0, %s47
      %s64 = sphi 0, %s48
      %s68 = sphi 0, %s68
      %s70 = sphi 0, %s68
      %s71 = sphi 0, %s70
      %s85 = sphi 0, %s71
      %s89 = sphi 0, %s89
      %s91 = sphi 0, %s89
      %s92 = sphi 0, %s91
      %s106 = sphi 0, %s92
      %s110 = sphi 0, %s110
      %s112 = sphi 0, %s110
      %s113 = sphi 0, %s112
      %s127 = sphi 0, %s113
      %s131 = sphi 0, %s131
      %s133 = sphi 0, %s131
      %s134 = sphi 0, %s133
      %s148 = sphi 0, %s134
      %s152 = sphi 0, %s152
      %s154 = sphi 0, %s152
      %s155 = sphi 0, %s154
      %s169 = sphi 0, %s155
      %s173 = sphi 0, %s173
      %s175 = sphi 0, %s173
      %s176 = sphi 0, %s175
      %s190 = sphi 0, %s176
      %s194 = sphi 0, %s194
      %s196 = sphi 0, %s194
      %s197 = sphi 0, %s196
      %s211 = sphi 0, %s197
      %s215 = sphi 0, %s215
      %s217 = sphi 0, %s215
      %s218 = sphi 0, %s217
      %s232 = sphi 0, %s218
      %s238 = sphi 0, %s240
      %s241 = sphi 0, %s238
      %s242 = sphi 0, %s241
      %s258 = sphi 0, %s242
    $region4: #{tpu_custom_call.1} parent=1 // loop_header_branch
      %25 = sbr.rel (%p23) target = $region8
    $region5: #{tpu_custom_call.1} parent=1 // loop_body
      %s27 = ssub.s32 %s22, 1
      %s28 = ssub.s32 %s22, 2
      %s35 = sadd.s32 1, %s30
      %p36 = scmp.ge.s32.totalorder %s35, 3
      %s37 = scalar_select %p36, 0, %s35
      %s38 = sadd.s32 1, %s29
      %s39 = scalar_select %p36, %s38, %s29
      %p40 = scmp.ge.s32.totalorder %s39, 3
      %s41 = scalar_select %p40, 0, %s39
      %s42 = ssub.s32 %s30, %s37
      %p43 = scmp.eq.s32.totalorder %s42, 0
      %s45 = sadd.s32 %s44, 1
      %s46 = scalar_select %p43, %s44, %s45
      %p49 = pneg %p43
      %p50 = scmp.eq.s32.totalorder %s22, 8
      %p51 = por %p49, %p50
      %p52 = scmp.ne.s32.totalorder %s44, %s47
      %p53 = scmp.eq.s32.totalorder %s22, 0
      %p54 = por %p52, %p53
      %p55 = scmp.ne.s32.totalorder %s44, %s47
      %p56 = scmp.eq.s32.totalorder %s27, 8
      %p57 = por %p55, %p56
      %p58 = scmp.ne.s32.totalorder %s47, %s48
      %p59 = scmp.eq.s32.totalorder %s27, 0
      %p60 = por %p58, %p59
      %p61 = scmp.ne.s32.totalorder %s47, %s48
      %p62 = scmp.eq.s32.totalorder %s28, 8
      %p63 = por %p61, %p62
      %p65 = scmp.ne.s32.totalorder %s48, %s64
      %p66 = scmp.eq.s32.totalorder %s28, 0
      %p67 = por %p65, %p66
      %s69 = sadd.s32 %s68, 1
      %p72 = scmp.eq.s32.totalorder %s22, 8
      %p73 = scmp.ne.s32.totalorder %s68, %s70
      %p74 = scmp.eq.s32.totalorder %s22, 0
      %p75 = por %p73, %p74
      %p76 = scmp.ne.s32.totalorder %s68, %s70
      %p77 = scmp.eq.s32.totalorder %s27, 8
      %p78 = por %p76, %p77
      %p79 = scmp.ne.s32.totalorder %s70, %s71
      %p80 = scmp.eq.s32.totalorder %s27, 0
      %p81 = por %p79, %p80
      %p82 = scmp.ne.s32.totalorder %s70, %s71
      %p83 = scmp.eq.s32.totalorder %s28, 8
      %p84 = por %p82, %p83
      %p86 = scmp.ne.s32.totalorder %s71, %s85
      %p87 = scmp.eq.s32.totalorder %s28, 0
      %p88 = por %p86, %p87
      %s90 = sadd.s32 %s89, 1
      %p93 = scmp.eq.s32.totalorder %s22, 8
      %p94 = scmp.ne.s32.totalorder %s89, %s91
      %p95 = scmp.eq.s32.totalorder %s22, 0
      %p96 = por %p94, %p95
      %p97 = scmp.ne.s32.totalorder %s89, %s91
      %p98 = scmp.eq.s32.totalorder %s27, 8
      %p99 = por %p97, %p98
      %p100 = scmp.ne.s32.totalorder %s91, %s92
      %p101 = scmp.eq.s32.totalorder %s27, 0
      %p102 = por %p100, %p101
      %p103 = scmp.ne.s32.totalorder %s91, %s92
      %p104 = scmp.eq.s32.totalorder %s28, 8
      %p105 = por %p103, %p104
      %p107 = scmp.ne.s32.totalorder %s92, %s106
      %p108 = scmp.eq.s32.totalorder %s28, 0
      %p109 = por %p107, %p108
      %s111 = sadd.s32 %s110, 1
      %p114 = scmp.eq.s32.totalorder %s22, 8
      %p115 = scmp.ne.s32.totalorder %s110, %s112
      %p116 = scmp.eq.s32.totalorder %s22, 0
      %p117 = por %p115, %p116
      %p118 = scmp.ne.s32.totalorder %s110, %s112
      %p119 = scmp.eq.s32.totalorder %s27, 8
      %p120 = por %p118, %p119
      %p121 = scmp.ne.s32.totalorder %s112, %s113
      %p122 = scmp.eq.s32.totalorder %s27, 0
      %p123 = por %p121, %p122
      %p124 = scmp.ne.s32.totalorder %s112, %s113
      %p125 = scmp.eq.s32.totalorder %s28, 8
      %p126 = por %p124, %p125
      %p128 = scmp.ne.s32.totalorder %s113, %s127
      %p129 = scmp.eq.s32.totalorder %s28, 0
      %p130 = por %p128, %p129
      %s132 = sadd.s32 %s131, 1
      %p135 = scmp.eq.s32.totalorder %s22, 8
      %p136 = scmp.ne.s32.totalorder %s131, %s133
      %p137 = scmp.eq.s32.totalorder %s22, 0
      %p138 = por %p136, %p137
      %p139 = scmp.ne.s32.totalorder %s131, %s133
      %p140 = scmp.eq.s32.totalorder %s27, 8
      %p141 = por %p139, %p140
      %p142 = scmp.ne.s32.totalorder %s133, %s134
      %p143 = scmp.eq.s32.totalorder %s27, 0
      %p144 = por %p142, %p143
      %p145 = scmp.ne.s32.totalorder %s133, %s134
      %p146 = scmp.eq.s32.totalorder %s28, 8
      %p147 = por %p145, %p146
      %p149 = scmp.ne.s32.totalorder %s134, %s148
      %p150 = scmp.eq.s32.totalorder %s28, 0
      %p151 = por %p149, %p150
      %s153 = sadd.s32 %s152, 1
      %p156 = scmp.eq.s32.totalorder %s22, 8
      %p157 = scmp.ne.s32.totalorder %s152, %s154
      %p158 = scmp.eq.s32.totalorder %s22, 0
      %p159 = por %p157, %p158
      %p160 = scmp.ne.s32.totalorder %s152, %s154
      %p161 = scmp.eq.s32.totalorder %s27, 8
      %p162 = por %p160, %p161
      %p163 = scmp.ne.s32.totalorder %s154, %s155
      %p164 = scmp.eq.s32.totalorder %s27, 0
      %p165 = por %p163, %p164
      %p166 = scmp.ne.s32.totalorder %s154, %s155
      %p167 = scmp.eq.s32.totalorder %s28, 8
      %p168 = por %p166, %p167
      %p170 = scmp.ne.s32.totalorder %s155, %s169
      %p171 = scmp.eq.s32.totalorder %s28, 0
      %p172 = por %p170, %p171
      %s174 = sadd.s32 %s173, 1
      %p177 = scmp.eq.s32.totalorder %s22, 8
      %p178 = scmp.ne.s32.totalorder %s173, %s175
      %p179 = scmp.eq.s32.totalorder %s22, 0
      %p180 = por %p178, %p179
      %p181 = scmp.ne.s32.totalorder %s173, %s175
      %p182 = scmp.eq.s32.totalorder %s27, 8
      %p183 = por %p181, %p182
      %p184 = scmp.ne.s32.totalorder %s175, %s176
      %p185 = scmp.eq.s32.totalorder %s27, 0
      %p186 = por %p184, %p185
      %p187 = scmp.ne.s32.totalorder %s175, %s176
      %p188 = scmp.eq.s32.totalorder %s28, 8
      %p189 = por %p187, %p188
      %p191 = scmp.ne.s32.totalorder %s176, %s190
      %p192 = scmp.eq.s32.totalorder %s28, 0
      %p193 = por %p191, %p192
      %s195 = sadd.s32 %s194, 1
      %p198 = scmp.eq.s32.totalorder %s22, 8
      %p199 = scmp.ne.s32.totalorder %s194, %s196
      %p200 = scmp.eq.s32.totalorder %s22, 0
      %p201 = por %p199, %p200
      %p202 = scmp.ne.s32.totalorder %s194, %s196
      %p203 = scmp.eq.s32.totalorder %s27, 8
      %p204 = por %p202, %p203
      %p205 = scmp.ne.s32.totalorder %s196, %s197
      %p206 = scmp.eq.s32.totalorder %s27, 0
      %p207 = por %p205, %p206
      %p208 = scmp.ne.s32.totalorder %s196, %s197
      %p209 = scmp.eq.s32.totalorder %s28, 8
      %p210 = por %p208, %p209
      %p212 = scmp.ne.s32.totalorder %s197, %s211
      %p213 = scmp.eq.s32.totalorder %s28, 0
      %p214 = por %p212, %p213
      %s216 = sadd.s32 %s215, 1
      %p219 = scmp.eq.s32.totalorder %s22, 8
      %p220 = scmp.ne.s32.totalorder %s215, %s217
      %p221 = scmp.eq.s32.totalorder %s22, 0
      %p222 = por %p220, %p221
      %p223 = scmp.ne.s32.totalorder %s215, %s217
      %p224 = scmp.eq.s32.totalorder %s27, 8
      %p225 = por %p223, %p224
      %p226 = scmp.ne.s32.totalorder %s217, %s218
      %p227 = scmp.eq.s32.totalorder %s27, 0
      %p228 = por %p226, %p227
      %p229 = scmp.ne.s32.totalorder %s217, %s218
      %p230 = scmp.eq.s32.totalorder %s28, 8
      %p231 = por %p229, %p230
      %p233 = scmp.ne.s32.totalorder %s218, %s232
      %p234 = scmp.eq.s32.totalorder %s28, 0
      %p235 = por %p233, %p234
      %s236 = ssub.s32 %s30, %s37
      %p237 = scmp.eq.s32.totalorder %s236, 0
      %s239 = sadd.s32 %s238, 1
      %s240 = scalar_select %p237, %s238, %s239
      %p243 = pneg %p237
      %p244 = scmp.eq.s32.totalorder %s22, 8
      %p245 = por %p243, %p244
      %p246 = scmp.ne.s32.totalorder %s238, %s241
      %p247 = scmp.eq.s32.totalorder %s22, 0
      %p248 = por %p246, %p247
      %p249 = scmp.ne.s32.totalorder %s238, %s241
      %p250 = scmp.eq.s32.totalorder %s27, 8
      %p251 = por %p249, %p250
      %p252 = scmp.ne.s32.totalorder %s241, %s242
      %p253 = scmp.eq.s32.totalorder %s27, 0
      %p254 = por %p252, %p253
      %p255 = scmp.ne.s32.totalorder %s241, %s242
      %p256 = scmp.eq.s32.totalorder %s28, 8
      %p257 = por %p255, %p256
      %p259 = scmp.ne.s32.totalorder %s242, %s258
      %p260 = scmp.eq.s32.totalorder %s28, 0
      %p261 = por %p259, %p260
      %p262 = scmp.le.s32.totalorder 1, %s22
      %p263 = scmp.lt.s32.totalorder %s22, 10
      %p264 = pnand %p262, %p263
      %p265 = pneg %p264
      // Predicated region
      $region9: #{tpu_custom_call.1} parent=5 // pred_check
        _
      $region10: #{tpu_custom_call.1} parent=5 // pred_check_branch
        %267 = sbr.rel (%p264) target = $region12
      $region11: #{tpu_custom_call.1} parent=5 // pred_region
        %s268 = ssub.s32 %s22, 1
        // Predicated region
        $region13: #{tpu_custom_call.1} parent=11 // pred_check
          %p269 = pneg %p81
        $region14: #{tpu_custom_call.1} parent=11 // pred_check_branch
          %271 = sbr.rel (%p269) target = $region16
        $region15: #{tpu_custom_call.1} parent=11 // pred_region
          %s273 = ssub.s32 3072, 3072
          %274 = vsyncadd [#allocation10], %s273
          %s275 = sshll.u32 [#allocation9], 4
          %s276 = int_to_ptr.vmem [resolvable:$true] %s275
          %281 = dma.hbm_to_vmem [thread:$0]  %s1, 3072, %s276, [#allocation10], 128, 128, 8
        $region16: #{tpu_custom_call.1} parent=11 // pred_fallthru
          _
        // Predicated region
        $region17: #{tpu_custom_call.1} parent=11 // pred_check
          %p282 = pneg %p102
        $region18: #{tpu_custom_call.1} parent=11 // pred_check_branch
          %284 = sbr.rel (%p282) target = $region20
        $region19: #{tpu_custom_call.1} parent=11 // pred_region
          _
        $region20: #{tpu_custom_call.1} parent=11 // pred_fallthru
          _
        // Predicated region
        $region21: #{tpu_custom_call.1} parent=11 // pred_check
          %p285 = pneg %p123
        $region22: #{tpu_custom_call.1} parent=11 // pred_check_branch
          %287 = sbr.rel (%p285) target = $region24
        $region23: #{tpu_custom_call.1} parent=11 // pred_region
          %s289 = ssub.s32 32, 32
          %290 = vsyncadd [#allocation10], %s289
          %s292 = sshll.u32 [#allocation11], 4
          %s293 = int_to_ptr.vmem [resolvable:$true] %s292
          %295 = dma.hbm_to_vmem [thread:$0]  %s3, 32, %s293, [#allocation10]
        $region24: #{tpu_custom_call.1} parent=11 // pred_fallthru
          _
        // Predicated region
        $region25: #{tpu_custom_call.1} parent=11 // pred_check
          %p296 = pneg %p144
        $region26: #{tpu_custom_call.1} parent=11 // pred_check_branch
          %298 = sbr.rel (%p296) target = $region28
        $region27: #{tpu_custom_call.1} parent=11 // pred_region
          %s300 = ssub.s32 8192, 8192
          %301 = vsyncadd [#allocation13], %s300
          %s302 = sshll.u32 [#allocation12], 4
          %s303 = int_to_ptr.vmem [resolvable:$true] %s302
          %308 = dma.hbm_to_vmem [thread:$0]  %s4, 8192, %s303, [#allocation13], 256, 256, 16
        $region28: #{tpu_custom_call.1} parent=11 // pred_fallthru
          _
        // Predicated region
        $region29: #{tpu_custom_call.1} parent=11 // pred_check
          %p309 = pneg %p165
        $region30: #{tpu_custom_call.1} parent=11 // pred_check_branch
          %311 = sbr.rel (%p309) target = $region32
        $region31: #{tpu_custom_call.1} parent=11 // pred_region
          _
        $region32: #{tpu_custom_call.1} parent=11 // pred_fallthru
          _
        // Predicated region
        $region33: #{tpu_custom_call.1} parent=11 // pred_check
          %p312 = pneg %p186
        $region34: #{tpu_custom_call.1} parent=11 // pred_check_branch
          %314 = sbr.rel (%p312) target = $region36
        $region35: #{tpu_custom_call.1} parent=11 // pred_region
          _
        $region36: #{tpu_custom_call.1} parent=11 // pred_fallthru
          _
        // Predicated region
        $region37: #{tpu_custom_call.1} parent=11 // pred_check
          %p315 = pneg %p207
        $region38: #{tpu_custom_call.1} parent=11 // pred_check_branch
          %317 = sbr.rel (%p315) target = $region40
        $region39: #{tpu_custom_call.1} parent=11 // pred_region
          _
        $region40: #{tpu_custom_call.1} parent=11 // pred_fallthru
          _
        // Predicated region
        $region41: #{tpu_custom_call.1} parent=11 // pred_check
          %p318 = pneg %p228
        $region42: #{tpu_custom_call.1} parent=11 // pred_check_branch
          %320 = sbr.rel (%p318) target = $region44
        $region43: #{tpu_custom_call.1} parent=11 // pred_region
          _
        $region44: #{tpu_custom_call.1} parent=11 // pred_fallthru
          _
      $region12: #{tpu_custom_call.1} parent=5 // pred_fallthru
        _
      %p321 = scmp.lt.s32.totalorder %s22, 9
      // Predicated region
      $region45: #{tpu_custom_call.1} parent=5 // pred_check
        %p322 = pneg %p321
      $region46: #{tpu_custom_call.1} parent=5 // pred_check_branch
        %324 = sbr.rel (%p322) target = $region48
      $region47: #{tpu_custom_call.1} parent=5 // pred_region
        // Predicated region
        $region49: #{tpu_custom_call.1} parent=47 // pred_check
          %p325 = pneg %p54
        $region50: #{tpu_custom_call.1} parent=47 // pred_check_branch
          %327 = sbr.rel (%p325) target = $region52
        $region51: #{tpu_custom_call.1} parent=47 // pred_region
          %s328 = sand.u32 %s44, 1
          %s329 = scalar_lea.sflag [#allocation8], %s328
          %s330 = sand.u32 %s44, 1
          %s331 = smul.addr %s330, 32
          %s332 = scalar_lea.vmem [#allocation7], %s331
          %s333 = smul.u32 4, %s30
          %s335 = ssub.s32 512, 512
          %336 = vsyncadd %s329, %s335
          %s337 = smul.addr %s333, 2
          %s338 = smul.addr %s337, 64
          %s339 = scalar_lea.hbm %s0, %s338
          %s340 = sshll.u32 %s332, 4
          %s341 = int_to_ptr.vmem [resolvable:$true] %s340
          %346 = dma.hbm_to_vmem [thread:$0]  %s339, 512, %s341, %s329, 128, 128, 8
        $region52: #{tpu_custom_call.1} parent=47 // pred_fallthru
          _
      $region48: #{tpu_custom_call.1} parent=5 // pred_fallthru
        _
      %p347 = scmp.le.s32.totalorder 1, %s22
      %p348 = scmp.lt.s32.totalorder %s22, 10
      %p349 = pnand %p347, %p348
      %p350 = pneg %p349
      // Predicated region
      $region53: #{tpu_custom_call.1} parent=5 // pred_check
        _
      $region54: #{tpu_custom_call.1} parent=5 // pred_check_branch
        %352 = sbr.rel (%p349) target = $region56
      $region55: #{tpu_custom_call.1} parent=5 // pred_region
        %s353 = ssub.s32 %s22, 1
        %s354 = sand.u32 %s47, 1
        %s355 = scalar_lea.sflag [#allocation8], %s354
        %s356 = sand.u32 %s47, 1
        %s357 = smul.addr %s356, 32
        %s358 = scalar_lea.vmem [#allocation7], %s357
        // Predicated region
        $region57: #{tpu_custom_call.1} parent=55 // pred_check
          %p359 = pneg %p60
        $region58: #{tpu_custom_call.1} parent=55 // pred_check_branch
          %361 = sbr.rel (%p359) target = $region60
        $region59: #{tpu_custom_call.1} parent=55 // pred_region
          %362 = dma.done %s355, 512
        $region60: #{tpu_custom_call.1} parent=55 // pred_fallthru
          _
        // Predicated region
        $region61: #{tpu_custom_call.1} parent=55 // pred_check
          %p363 = pneg %p81
        $region62: #{tpu_custom_call.1} parent=55 // pred_check_branch
          %365 = sbr.rel (%p363) target = $region64
        $region63: #{tpu_custom_call.1} parent=55 // pred_region
          %366 = dma.done [#allocation10], 3072
        $region64: #{tpu_custom_call.1} parent=55 // pred_fallthru
          _
        // Predicated region
        $region65: #{tpu_custom_call.1} parent=55 // pred_check
          %p367 = pneg %p123
        $region66: #{tpu_custom_call.1} parent=55 // pred_check_branch
          %369 = sbr.rel (%p367) target = $region68
        $region67: #{tpu_custom_call.1} parent=55 // pred_region
          %370 = dma.done [#allocation10], 32
        $region68: #{tpu_custom_call.1} parent=55 // pred_fallthru
          _
        // Predicated region
        $region69: #{tpu_custom_call.1} parent=55 // pred_check
          %p371 = pneg %p144
        $region70: #{tpu_custom_call.1} parent=55 // pred_check_branch
          %373 = sbr.rel (%p371) target = $region72
        $region71: #{tpu_custom_call.1} parent=55 // pred_region
          %374 = dma.done [#allocation13], 8192
        $region72: #{tpu_custom_call.1} parent=55 // pred_fallthru
          _
        %s375 = sand.u32 %s47, 1
        %s376 = scalar_lea.sflag [#allocation8], %s375
        %s377 = sand.u32 %s47, 1
        %s378 = smul.addr %s377, 32
        %s379 = scalar_lea.vmem [#allocation7], %s378
        %p380 = pneg %p60
        %p381 = pneg %p57
        %p382 = pneg %p81
        %p383 = pneg %p78
        %p384 = pneg %p102
        %p385 = pneg %p99
        %p386 = pneg %p123
        %p387 = pneg %p120
        %p388 = pneg %p144
        %p389 = pneg %p141
        %p390 = pneg %p165
        %p391 = pneg %p162
        %p392 = pneg %p186
        %p393 = pneg %p183
        %p394 = pneg %p207
        %p395 = pneg %p204
        %p396 = pneg %p228
        %p397 = pneg %p225
        %p398 = pneg %p254
        %p399 = pneg %p251
        %s400 = smul.u32 4, %s32
        %p401 = scmp.lt.s32.totalorder %s400, 11
        %s402 = scalar_select %p401, %s400, 11
        %s403 = smul.addr %s402, 8
        %s404 = scalar_lea.vmem %s9, %s403
        %s405 = smul.u32 4, %s32
        %s406 = smul.u32 4, %s32
        %p407 = scmp.lt.s32.totalorder %s406, 11
        %s408 = scalar_select %p407, %s406, 11
        %s409 = smul.addr %s408, 8
        %s410 = scalar_lea.vmem %s9, %s409
        %s411 = smul.u32 4, %s32
        %p413 = scmp.eq.s32.totalorder %s31, 0
        %p414 = scmp.eq.s32.totalorder %s32, 0
        %p415 = pnand %p413, %p414
        %p416 = pneg %p415
        // Predicated region
        $region73: #{tpu_custom_call.1} parent=55 // pred_check
          _
        $region74: #{tpu_custom_call.1} parent=55 // pred_check_branch
          %418 = sbr.rel (%p415) target = $region76
        $region75: #{tpu_custom_call.1} parent=55 // pred_region
          %v419 = vlaneseq
          %vm420 = vcmp.ge.s32.totalorder %v419, 0
          %vm421 = vcmp.lt.s32.totalorder %v419, 256
          %vm422 = vmand %vm420, %vm421
          %423 = vst.msk [vmem:[#allocation2] sm:$0x3] %vm422, 0.0
          %424 = vst.msk [vmem:[#allocation3] sm:$0x3] %vm422, 0.0
        $region76: #{tpu_custom_call.1} parent=55 // pred_fallthru
          _
        %p425 = scmp.eq.s32.totalorder %s31, 1
        %p426 = pnand %p425, %p414
        %p427 = pneg %p426
        // Predicated region
        $region77: #{tpu_custom_call.1} parent=55 // pred_check
          _
        $region78: #{tpu_custom_call.1} parent=55 // pred_check_branch
          %429 = sbr.rel (%p426) target = $region80
        $region79: #{tpu_custom_call.1} parent=55 // pred_region
          %v430 = vlaneseq
          %vm431 = vcmp.ge.s32.totalorder %v430, 0
          %vm432 = vcmp.lt.s32.totalorder %v430, 512
          %vm433 = vmand %vm431, %vm432
          %434 = vst.msk [vmem:[#allocation4] sm:$0xf] %vm433, 0.0
          %435 = vst.msk [vmem:[#allocation5] sm:$0xf] %vm433, 0.0
        $region80: #{tpu_custom_call.1} parent=55 // pred_fallthru
          _
        // Predicated region
        $region81: #{tpu_custom_call.1} parent=55 // pred_check
          %p436 = pneg %p413
        $region82: #{tpu_custom_call.1} parent=55 // pred_check_branch
          %438 = sbr.rel (%p436) target = $region84
        $region83: #{tpu_custom_call.1} parent=55 // pred_region
          %v439 = vld [vmem:[%s358] sm:$0xff]
          %v440 = vld [vmem:[%s358 + $0x8] sm:$0xff]
          %v441 = vld [vmem:[%s358 + $0x10] sm:$0xff]
          %v442 = vld [vmem:[%s358 + $0x18] sm:$0xff]
          %v443 = vld [vmem:[#allocation9] sm:$0xff]
          %v444 = vld [vmem:[#allocation9 + $0x8] sm:$0xff]
          %v445 = vld [vmem:[#allocation9 + $0x10] sm:$0xff]
          %v446 = vld [vmem:[#allocation9 + $0x18] sm:$0xff]
          %v447 = vld [vmem:[#allocation9 + $0x20] sm:$0xff]
          %v448 = vld [vmem:[#allocation9 + $0x28] sm:$0xff]
          %v449 = vld [vmem:[#allocation9 + $0x30] sm:$0xff]
          %v450 = vld [vmem:[#allocation9 + $0x38] sm:$0xff]
          %v451 = vld [vmem:[#allocation9 + $0x40] sm:$0xff]
          %v452 = vld [vmem:[#allocation9 + $0x48] sm:$0xff]
          %v453 = vld [vmem:[#allocation9 + $0x50] sm:$0xff]
          %v454 = vld [vmem:[#allocation9 + $0x58] sm:$0xff]
          %v455 = vld [vmem:[#allocation9 + $0x60] sm:$0xff]
          %v456 = vld [vmem:[#allocation9 + $0x68] sm:$0xff]
          %v457 = vld [vmem:[#allocation9 + $0x70] sm:$0xff]
          %v458 = vld [vmem:[#allocation9 + $0x78] sm:$0xff]
          %v459 = vld [vmem:[#allocation9 + $0x80] sm:$0xff]
          %v460 = vld [vmem:[#allocation9 + $0x88] sm:$0xff]
          %v461 = vld [vmem:[#allocation9 + $0x90] sm:$0xff]
          %v462 = vld [vmem:[#allocation9 + $0x98] sm:$0xff]
          %v463 = vld [vmem:[#allocation9 + $0xa0] sm:$0xff]
          %v464 = vld [vmem:[#allocation9 + $0xa8] sm:$0xff]
          %v465 = vld [vmem:[#allocation9 + $0xb0] sm:$0xff]
          %v466 = vld [vmem:[#allocation9 + $0xb8] sm:$0xff]
          %v471 = vunpack.c.l.b16 %v439
          %v472 = vunpack.c.h.b16 %v439
          %v473 = vunpack.c.l.b16 %v440
          %v474 = vunpack.c.h.b16 %v440
          %v475 = vunpack.c.l.b16 %v441
          %v476 = vunpack.c.h.b16 %v441
          %v477 = vunpack.c.l.b16 %v442
          %v478 = vunpack.c.h.b16 %v442
          %v479 = vpack.c.b16 %v473, %v471
          %v480 = vpack.c.b16 %v474, %v472
          %v481 = vpack.c.b16 %v477, %v475
          %v482 = vpack.c.b16 %v478, %v476
          %v509 = vunpack.c.l.b16 %v443
          %v510 = vunpack.c.h.b16 %v443
          %v511 = vunpack.c.l.b16 %v444
          %v512 = vunpack.c.h.b16 %v444
          %v513 = vunpack.c.l.b16 %v445
          %v514 = vunpack.c.h.b16 %v445
          %v515 = vunpack.c.l.b16 %v446
          %v516 = vunpack.c.h.b16 %v446
          %v517 = vunpack.c.l.b16 %v447
          %v518 = vunpack.c.h.b16 %v447
          %v519 = vunpack.c.l.b16 %v448
          %v520 = vunpack.c.h.b16 %v448
          %v521 = vunpack.c.l.b16 %v449
          %v522 = vunpack.c.h.b16 %v449
          %v523 = vunpack.c.l.b16 %v450
          %v524 = vunpack.c.h.b16 %v450
          %v525 = vunpack.c.l.b16 %v451
          %v526 = vunpack.c.h.b16 %v451
          %v527 = vunpack.c.l.b16 %v452
          %v528 = vunpack.c.h.b16 %v452
          %v529 = vunpack.c.l.b16 %v453
          %v530 = vunpack.c.h.b16 %v453
          %v531 = vunpack.c.l.b16 %v454
          %v532 = vunpack.c.h.b16 %v454
          %v533 = vunpack.c.l.b16 %v455
          %v534 = vunpack.c.h.b16 %v455
          %v535 = vunpack.c.l.b16 %v456
          %v536 = vunpack.c.h.b16 %v456
          %v537 = vunpack.c.l.b16 %v457
          %v538 = vunpack.c.h.b16 %v457
          %v539 = vunpack.c.l.b16 %v458
          %v540 = vunpack.c.h.b16 %v458
          %v541 = vunpack.c.l.b16 %v459
          %v542 = vunpack.c.h.b16 %v459
          %v543 = vunpack.c.l.b16 %v460
          %v544 = vunpack.c.h.b16 %v460
          %v545 = vunpack.c.l.b16 %v461
          %v546 = vunpack.c.h.b16 %v461
          %v547 = vunpack.c.l.b16 %v462
          %v548 = vunpack.c.h.b16 %v462
          %v549 = vunpack.c.l.b16 %v463
          %v550 = vunpack.c.h.b16 %v463
          %v551 = vunpack.c.l.b16 %v464
          %v552 = vunpack.c.h.b16 %v464
          %v553 = vunpack.c.l.b16 %v465
          %v554 = vunpack.c.h.b16 %v465
          %v555 = vunpack.c.l.b16 %v466
          %v556 = vunpack.c.h.b16 %v466
          %v557 = vpack.c.b16 %v511, %v509
          %v558 = vpack.c.b16 %v512, %v510
          %v559 = vpack.c.b16 %v515, %v513
          %v560 = vpack.c.b16 %v516, %v514
          %v561 = vpack.c.b16 %v519, %v517
          %v562 = vpack.c.b16 %v520, %v518
          %v563 = vpack.c.b16 %v523, %v521
          %v564 = vpack.c.b16 %v524, %v522
          %v565 = vpack.c.b16 %v527, %v525
          %v566 = vpack.c.b16 %v528, %v526
          %v567 = vpack.c.b16 %v531, %v529
          %v568 = vpack.c.b16 %v532, %v530
          %v569 = vpack.c.b16 %v535, %v533
          %v570 = vpack.c.b16 %v536, %v534
          %v571 = vpack.c.b16 %v539, %v537
          %v572 = vpack.c.b16 %v540, %v538
          %v573 = vpack.c.b16 %v543, %v541
          %v574 = vpack.c.b16 %v544, %v542
          %v575 = vpack.c.b16 %v547, %v545
          %v576 = vpack.c.b16 %v548, %v546
          %v577 = vpack.c.b16 %v551, %v549
          %v578 = vpack.c.b16 %v552, %v550
          %v579 = vpack.c.b16 %v555, %v553
          %v580 = vpack.c.b16 %v556, %v554
          %vm605 = vcmask 523264
          %v607 = vsel %vm605, %v480, 0
          %v610 = vsel %vm605, %v482, 0
          %612 = vmatprep.subr.bf16.mxu0 %v558
          %613 = vmatpush1.bf16.msra.mxu0 %v557
          %614 = vmatprep.subr.bf16.mxu0 %v560
          %615 = vmatpush1.bf16.msra.mxu0 %v559
          %616 = vmatprep.subr.bf16.mxu0 %v562
          %617 = vmatpush1.bf16.msra.mxu0 %v561
          %618 = vmatprep.subr.bf16.mxu0 %v564
          %619 = vmatpush1.bf16.msra.mxu0 %v563
          %620 = vmatprep.subr.bf16.mxu0 %v566
          %621 = vmatpush1.bf16.msra.mxu0 %v565
          %622 = vmatprep.subr.bf16.mxu0 %v568
          %623 = vmatpush1.bf16.msra.mxu0 %v567
          %624 = vmatprep.subr.bf16.mxu0 %v570
          %625 = vmatpush1.bf16.msra.mxu0 %v569
          %626 = vmatprep.subr.bf16.mxu0 %v572
          %627 = vmatpush1.bf16.msra.mxu0 %v571
          %628 = vmatprep.subr.bf16.mxu0 %v574
          %629 = vmatpush1.bf16.msra.mxu0 %v573
          %630 = vmatprep.subr.bf16.mxu0 %v576
          %631 = vmatpush1.bf16.msra.mxu0 %v575
          %632 = vmatprep.subr.bf16.mxu0 %v578
          %633 = vmatpush1.bf16.msra.mxu0 %v577
          %634 = vmatprep.subr.bf16.mxu0 %v580
          %635 = vmatpush1.bf16.msra.mxu0 %v579
          %636 = vmatprep.subr.bf16.mxu0 0
          %637 = vmatpush1.bf16.msra.mxu0 0
          %638 = vmatprep.subr.bf16.mxu0 0
          %639 = vmatpush1.bf16.msra.mxu0 0
          %640 = vmatprep.subr.bf16.mxu0 0
          %641 = vmatpush1.bf16.msra.mxu0 0
          %642 = vmatprep.subr.bf16.mxu0 0
          %643 = vmatpush1.bf16.msra.mxu0 0
          %644 = vmatprep.mubr.bf16.mxu0 %v607
          %645 = vmatmul.mubr.bf16.gmra.mrb[0].mxu0 %v479
          %v646 = vpop.f32.mrb[0].mxu0
          %v647 = vadd.f32 0.0, %v646
          %v648 = vpop.f32.mrb[0].mxu0
          %v649 = vadd.f32 0.0, %v648
          %v650 = vpop.f32.mrb[0].mxu0
          %v651 = vadd.f32 0.0, %v650
          %v652 = vpop.f32.mrb[0].mxu0
          %v653 = vadd.f32 0.0, %v652
          %654 = vmatprep.mubr.bf16.mxu0 %v610
          %655 = vmatmul.mubr.bf16.gmra.mrb[0].mxu0 %v481
          %v656 = vpop.f32.mrb[0].mxu0
          %v657 = vadd.f32 0.0, %v656
          %v658 = vpop.f32.mrb[0].mxu0
          %v659 = vadd.f32 0.0, %v658
          %v660 = vpop.f32.mrb[0].mxu0
          %v661 = vadd.f32 0.0, %v660
          %v662 = vpop.f32.mrb[0].mxu0
          %v663 = vadd.f32 0.0, %v662
          %664 = vdwg.mxu0
          %v665 = vld [vmem:[#allocation2] sm:$0x3]
          %v666 = vadd.f32 %v647, %v651
          %v667 = vadd.f32 %v666, %v657
          %v668 = vadd.f32 %v667, %v661
          %v669 = vrot.slane %v668, 4
          %v670 = vadd.f32 %v668, %v669
          %v671 = vrot.slane %v670, 2
          %v672 = vadd.f32 %v670, %v671
          %v673 = vrot.slane %v672, 1
          %v674 = vadd.f32 %v672, %v673
          %v675 = vadd.f32 %v649, %v653
          %v676 = vadd.f32 %v675, %v659
          %v677 = vadd.f32 %v676, %v663
          %v678 = vrot.slane %v677, 4
          %v679 = vadd.f32 %v677, %v678
          %v680 = vrot.slane %v679, 2
          %v681 = vadd.f32 %v679, %v680
          %v682 = vrot.slane %v681, 1
          %v683 = vadd.f32 %v681, %v682
          %v686 = vcombine.low %v674, %v683
          %v688 = vunpack.c.l.s4 1966171168
          %v689 = vunpack.c.0.s8 %v688
          %v690 = vlaneseq
          %v691 = vshrl.u32 %v690, 7
          %v692 = vsub.s32 %v689, %v691
          %v693 = vrot.slane %v686, %v692
          %v695 = vunpack.c.l.s4 1966171168
          %v696 = vunpack.c.0.s8 %v695
          %v697 = vlaneseq
          %v698 = vshrl.u32 %v697, 7
          %v699 = vsub.s32 %v696, %v698
          %v700 = vrot.slane %v693, %v699
          %v702 = vadd.f32 %v665, %v700
          %v703 = vlaneseq
          %vm704 = vcmp.ge.s32.totalorder %v703, 0
          %vm705 = vcmp.lt.s32.totalorder %v703, 256
          %vm706 = vmand %vm704, %vm705
          %707 = vst.msk [vmem:[#allocation2] sm:$0x3] %vm706, %v702
          %v708 = vld [vmem:[#allocation3] sm:$0x3]
          %v709 = vmul.f32 %v647, %v647
          %v710 = vmul.f32 %v649, %v649
          %v711 = vmul.f32 %v651, %v651
          %v712 = vmul.f32 %v653, %v653
          %v713 = vmul.f32 %v657, %v657
          %v714 = vmul.f32 %v659, %v659
          %v715 = vmul.f32 %v661, %v661
          %v716 = vmul.f32 %v663, %v663
          %v717 = vadd.f32 %v709, %v711
          %v718 = vadd.f32 %v717, %v713
          %v719 = vadd.f32 %v718, %v715
          %v720 = vrot.slane %v719, 4
          %v721 = vadd.f32 %v719, %v720
          %v722 = vrot.slane %v721, 2
          %v723 = vadd.f32 %v721, %v722
          %v724 = vrot.slane %v723, 1
          %v725 = vadd.f32 %v723, %v724
          %v726 = vadd.f32 %v710, %v712
          %v727 = vadd.f32 %v726, %v714
          %v728 = vadd.f32 %v727, %v716
          %v729 = vrot.slane %v728, 4
          %v730 = vadd.f32 %v728, %v729
          %v731 = vrot.slane %v730, 2
          %v732 = vadd.f32 %v730, %v731
          %v733 = vrot.slane %v732, 1
          %v734 = vadd.f32 %v732, %v733
          %v737 = vcombine.low %v725, %v734
          %v739 = vunpack.c.l.s4 1966171168
          %v740 = vunpack.c.0.s8 %v739
          %v741 = vlaneseq
          %v742 = vshrl.u32 %v741, 7
          %v743 = vsub.s32 %v740, %v742
          %v744 = vrot.slane %v737, %v743
          %v746 = vunpack.c.l.s4 1966171168
          %v747 = vunpack.c.0.s8 %v746
          %v748 = vlaneseq
          %v749 = vshrl.u32 %v748, 7
          %v750 = vsub.s32 %v747, %v749
          %v751 = vrot.slane %v744, %v750
          %v753 = vadd.f32 %v708, %v751
          %754 = vst.msk [vmem:[#allocation3] sm:$0x3] %vm706, %v753
          %vm755 = vcmask 7168
          %756 = vst.msk [vmem:[%s410] sm:$0xff] %vm755, 0.0
          %757 = vst.msk [vmem:[%s410 + $0x8] sm:$0xff] %vm755, 0.0
          %758 = vst.msk [vmem:[%s410 + $0x10] sm:$0xff] %vm755, 0.0
          %759 = vst.msk [vmem:[%s410 + $0x18] sm:$0xff] %vm755, 0.0
        $region84: #{tpu_custom_call.1} parent=55 // pred_fallthru
          _
        // Predicated region
        $region85: #{tpu_custom_call.1} parent=55 // pred_check
          %p760 = pneg %p425
        $region86: #{tpu_custom_call.1} parent=55 // pred_check_branch
          %762 = sbr.rel (%p760) target = $region88
        $region87: #{tpu_custom_call.1} parent=55 // pred_region
          %v763 = vld [vmem:[%s358] sm:$0xff]
          %v764 = vld [vmem:[%s358 + $0x8] sm:$0xff]
          %v765 = vld [vmem:[%s358 + $0x10] sm:$0xff]
          %v766 = vld [vmem:[%s358 + $0x18] sm:$0xff]
          %v767 = vld [vmem:[#allocation9] sm:$0xff]
          %v768 = vld [vmem:[#allocation9 + $0x8] sm:$0xff]
          %v769 = vld [vmem:[#allocation9 + $0x10] sm:$0xff]
          %v770 = vld [vmem:[#allocation9 + $0x18] sm:$0xff]
          %v771 = vld [vmem:[#allocation9 + $0x20] sm:$0xff]
          %v772 = vld [vmem:[#allocation9 + $0x28] sm:$0xff]
          %v773 = vld [vmem:[#allocation9 + $0x30] sm:$0xff]
          %v774 = vld [vmem:[#allocation9 + $0x38] sm:$0xff]
          %v775 = vld [vmem:[#allocation9 + $0x40] sm:$0xff]
          %v776 = vld [vmem:[#allocation9 + $0x48] sm:$0xff]
          %v777 = vld [vmem:[#allocation9 + $0x50] sm:$0xff]
          %v778 = vld [vmem:[#allocation9 + $0x58] sm:$0xff]
          %v779 = vld [vmem:[#allocation9 + $0x60] sm:$0xff]
          %v780 = vld [vmem:[#allocation9 + $0x68] sm:$0xff]
          %v781 = vld [vmem:[#allocation9 + $0x70] sm:$0xff]
          %v782 = vld [vmem:[#allocation9 + $0x78] sm:$0xff]
          %v783 = vld [vmem:[#allocation9 + $0x80] sm:$0xff]
          %v784 = vld [vmem:[#allocation9 + $0x88] sm:$0xff]
          %v785 = vld [vmem:[#allocation9 + $0x90] sm:$0xff]
          %v786 = vld [vmem:[#allocation9 + $0x98] sm:$0xff]
          %v787 = vld [vmem:[#allocation9 + $0xa0] sm:$0xff]
          %v788 = vld [vmem:[#allocation9 + $0xa8] sm:$0xff]
          %v789 = vld [vmem:[#allocation9 + $0xb0] sm:$0xff]
          %v790 = vld [vmem:[#allocation9 + $0xb8] sm:$0xff]
          %v795 = vunpack.c.l.b16 %v763
          %v796 = vunpack.c.h.b16 %v763
          %v797 = vunpack.c.l.b16 %v764
          %v798 = vunpack.c.h.b16 %v764
          %v799 = vunpack.c.l.b16 %v765
          %v800 = vunpack.c.h.b16 %v765
          %v801 = vunpack.c.l.b16 %v766
          %v802 = vunpack.c.h.b16 %v766
          %v803 = vpack.c.b16 %v797, %v795
          %v804 = vpack.c.b16 %v798, %v796
          %v805 = vpack.c.b16 %v801, %v799
          %v806 = vpack.c.b16 %v802, %v800
          %v833 = vunpack.c.l.b16 %v767
          %v834 = vunpack.c.h.b16 %v767
          %v835 = vunpack.c.l.b16 %v768
          %v836 = vunpack.c.h.b16 %v768
          %v837 = vunpack.c.l.b16 %v769
          %v838 = vunpack.c.h.b16 %v769
          %v839 = vunpack.c.l.b16 %v770
          %v840 = vunpack.c.h.b16 %v770
          %v841 = vunpack.c.l.b16 %v771
          %v842 = vunpack.c.h.b16 %v771
          %v843 = vunpack.c.l.b16 %v772
          %v844 = vunpack.c.h.b16 %v772
          %v845 = vunpack.c.l.b16 %v773
          %v846 = vunpack.c.h.b16 %v773
          %v847 = vunpack.c.l.b16 %v774
          %v848 = vunpack.c.h.b16 %v774
          %v849 = vunpack.c.l.b16 %v775
          %v850 = vunpack.c.h.b16 %v775
          %v851 = vunpack.c.l.b16 %v776
          %v852 = vunpack.c.h.b16 %v776
          %v853 = vunpack.c.l.b16 %v777
          %v854 = vunpack.c.h.b16 %v777
          %v855 = vunpack.c.l.b16 %v778
          %v856 = vunpack.c.h.b16 %v778
          %v857 = vunpack.c.l.b16 %v779
          %v858 = vunpack.c.h.b16 %v779
          %v859 = vunpack.c.l.b16 %v780
          %v860 = vunpack.c.h.b16 %v780
          %v861 = vunpack.c.l.b16 %v781
          %v862 = vunpack.c.h.b16 %v781
          %v863 = vunpack.c.l.b16 %v782
          %v864 = vunpack.c.h.b16 %v782
          %v865 = vunpack.c.l.b16 %v783
          %v866 = vunpack.c.h.b16 %v783
          %v867 = vunpack.c.l.b16 %v784
          %v868 = vunpack.c.h.b16 %v784
          %v869 = vunpack.c.l.b16 %v785
          %v870 = vunpack.c.h.b16 %v785
          %v871 = vunpack.c.l.b16 %v786
          %v872 = vunpack.c.h.b16 %v786
          %v873 = vunpack.c.l.b16 %v787
          %v874 = vunpack.c.h.b16 %v787
          %v875 = vunpack.c.l.b16 %v788
          %v876 = vunpack.c.h.b16 %v788
          %v877 = vunpack.c.l.b16 %v789
          %v878 = vunpack.c.h.b16 %v789
          %v879 = vunpack.c.l.b16 %v790
          %v880 = vunpack.c.h.b16 %v790
          %v881 = vpack.c.b16 %v835, %v833
          %v882 = vpack.c.b16 %v836, %v834
          %v883 = vpack.c.b16 %v839, %v837
          %v884 = vpack.c.b16 %v840, %v838
          %v885 = vpack.c.b16 %v843, %v841
          %v886 = vpack.c.b16 %v844, %v842
          %v887 = vpack.c.b16 %v847, %v845
          %v888 = vpack.c.b16 %v848, %v846
          %v889 = vpack.c.b16 %v851, %v849
          %v890 = vpack.c.b16 %v852, %v850
          %v891 = vpack.c.b16 %v855, %v853
          %v892 = vpack.c.b16 %v856, %v854
          %v893 = vpack.c.b16 %v859, %v857
          %v894 = vpack.c.b16 %v860, %v858
          %v895 = vpack.c.b16 %v863, %v861
          %v896 = vpack.c.b16 %v864, %v862
          %v897 = vpack.c.b16 %v867, %v865
          %v898 = vpack.c.b16 %v868, %v866
          %v899 = vpack.c.b16 %v871, %v869
          %v900 = vpack.c.b16 %v872, %v870
          %v901 = vpack.c.b16 %v875, %v873
          %v902 = vpack.c.b16 %v876, %v874
          %v903 = vpack.c.b16 %v879, %v877
          %v904 = vpack.c.b16 %v880, %v878
          %vm929 = vcmask 523264
          %v931 = vsel %vm929, %v804, 0
          %v934 = vsel %vm929, %v806, 0
          %936 = vmatprep.subr.bf16.mxu0 %v882
          %937 = vmatpush1.bf16.msra.mxu0 %v881
          %938 = vmatprep.subr.bf16.mxu0 %v884
          %939 = vmatpush1.bf16.msra.mxu0 %v883
          %940 = vmatprep.subr.bf16.mxu0 %v886
          %941 = vmatpush1.bf16.msra.mxu0 %v885
          %942 = vmatprep.subr.bf16.mxu0 %v888
          %943 = vmatpush1.bf16.msra.mxu0 %v887
          %944 = vmatprep.subr.bf16.mxu0 %v890
          %945 = vmatpush1.bf16.msra.mxu0 %v889
          %946 = vmatprep.subr.bf16.mxu0 %v892
          %947 = vmatpush1.bf16.msra.mxu0 %v891
          %948 = vmatprep.subr.bf16.mxu0 %v894
          %949 = vmatpush1.bf16.msra.mxu0 %v893
          %950 = vmatprep.subr.bf16.mxu0 %v896
          %951 = vmatpush1.bf16.msra.mxu0 %v895
          %952 = vmatprep.subr.bf16.mxu0 %v898
          %953 = vmatpush1.bf16.msra.mxu0 %v897
          %954 = vmatprep.subr.bf16.mxu0 %v900
          %955 = vmatpush1.bf16.msra.mxu0 %v899
          %956 = vmatprep.subr.bf16.mxu0 %v902
          %957 = vmatpush1.bf16.msra.mxu0 %v901
          %958 = vmatprep.subr.bf16.mxu0 %v904
          %959 = vmatpush1.bf16.msra.mxu0 %v903
          %960 = vmatprep.subr.bf16.mxu0 0
          %961 = vmatpush1.bf16.msra.mxu0 0
          %962 = vmatprep.subr.bf16.mxu0 0
          %963 = vmatpush1.bf16.msra.mxu0 0
          %964 = vmatprep.subr.bf16.mxu0 0
          %965 = vmatpush1.bf16.msra.mxu0 0
          %966 = vmatprep.subr.bf16.mxu0 0
          %967 = vmatpush1.bf16.msra.mxu0 0
          %968 = vmatprep.mubr.bf16.mxu0 %v931
          %969 = vmatmul.mubr.bf16.gmra.mrb[0].mxu0 %v803
          %v970 = vpop.f32.mrb[0].mxu0
          %v971 = vadd.f32 0.0, %v970
          %v972 = vpop.f32.mrb[0].mxu0
          %v973 = vadd.f32 0.0, %v972
          %v974 = vpop.f32.mrb[0].mxu0
          %v975 = vadd.f32 0.0, %v974
          %v976 = vpop.f32.mrb[0].mxu0
          %v977 = vadd.f32 0.0, %v976
          %978 = vmatprep.mubr.bf16.mxu0 %v934
          %979 = vmatmul.mubr.bf16.gmra.mrb[0].mxu0 %v805
          %v980 = vpop.f32.mrb[0].mxu0
          %v981 = vadd.f32 0.0, %v980
          %v982 = vpop.f32.mrb[0].mxu0
          %v983 = vadd.f32 0.0, %v982
          %v984 = vpop.f32.mrb[0].mxu0
          %v985 = vadd.f32 0.0, %v984
          %v986 = vpop.f32.mrb[0].mxu0
          %v987 = vadd.f32 0.0, %v986
          %988 = vdwg.mxu0
          %v989 = vld [vmem:[#allocation2] sm:$0x3]
          %v990 = vmul.f32 %v989, 0.0125
          %v991 = vld [vmem:[#allocation3] sm:$0x3]
          %v992 = vmul.f32 %v991, 0.0125
          %v993 = vmul.f32 %v990, %v990
          %v994 = vsub.f32 %v992, %v993
          %v995 = vmax.f32 %v994, 0.0
          %v996 = vadd.f32 %v995, 1e-05
          %v997 = vrsqrt.pop %v996
          %v999 = vlaneseq
          %v1000 = vshrl.u32 %v999, 7
          %v1001 = vsub.s32 0, %v1000
          %v1002 = vrot.slane %v990, %v1001
          %v1003 = vlaneseq
          %v1004 = vshrl.u32 %v1003, 7
          %v1005 = vsub.s32 1, %v1004
          %v1006 = vrot.slane %v990, %v1005
          %v1009 = vsub.f32 %v971, %v1002
          %v1010 = vsub.f32 %v973, %v1006
          %v1011 = vsub.f32 %v975, %v1002
          %v1012 = vsub.f32 %v977, %v1006
          %v1013 = vsub.f32 %v981, %v1002
          %v1014 = vsub.f32 %v983, %v1006
          %v1015 = vsub.f32 %v985, %v1002
          %v1016 = vsub.f32 %v987, %v1006
          %v1018 = vlaneseq
          %v1019 = vshrl.u32 %v1018, 7
          %v1020 = vsub.s32 0, %v1019
          %v1021 = vrot.slane %v997, %v1020
          %v1022 = vlaneseq
          %v1023 = vshrl.u32 %v1022, 7
          %v1024 = vsub.s32 1, %v1023
          %v1025 = vrot.slane %v997, %v1024
          %v1028 = vmul.f32 %v1009, %v1021
          %v1029 = vmul.f32 %v1010, %v1025
          %v1030 = vmul.f32 %v1011, %v1021
          %v1031 = vmul.f32 %v1012, %v1025
          %v1032 = vmul.f32 %v1013, %v1021
          %v1033 = vmul.f32 %v1014, %v1025
          %v1034 = vmul.f32 %v1015, %v1021
          %v1035 = vmul.f32 %v1016, %v1025
          %v1036 = vld [vmem:[%s2] sm:$0x3]
          %v1038 = vlaneseq
          %v1039 = vshrl.u32 %v1038, 7
          %v1040 = vsub.s32 0, %v1039
          %v1041 = vrot.slane %v1036, %v1040
          %v1042 = vlaneseq
          %v1043 = vshrl.u32 %v1042, 7
          %v1044 = vsub.s32 1, %v1043
          %v1045 = vrot.slane %v1036, %v1044
          %v1048 = vmul.f32 %v1028, %v1041
          %v1049 = vmul.f32 %v1029, %v1045
          %v1050 = vmul.f32 %v1030, %v1041
          %v1051 = vmul.f32 %v1031, %v1045
          %v1052 = vmul.f32 %v1032, %v1041
          %v1053 = vmul.f32 %v1033, %v1045
          %v1054 = vmul.f32 %v1034, %v1041
          %v1055 = vmul.f32 %v1035, %v1045
          %v1056 = vld [vmem:[#allocation11] sm:$0x3]
          %v1058 = vlaneseq
          %v1059 = vshrl.u32 %v1058, 7
          %v1060 = vsub.s32 0, %v1059
          %v1061 = vrot.slane %v1056, %v1060
          %v1062 = vlaneseq
          %v1063 = vshrl.u32 %v1062, 7
          %v1064 = vsub.s32 1, %v1063
          %v1065 = vrot.slane %v1056, %v1064
          %v1068 = vadd.f32 %v1048, %v1061
          %v1069 = vadd.f32 %v1049, %v1065
          %v1070 = vadd.f32 %v1050, %v1061
          %v1071 = vadd.f32 %v1051, %v1065
          %v1072 = vadd.f32 %v1052, %v1061
          %v1073 = vadd.f32 %v1053, %v1065
          %v1074 = vadd.f32 %v1054, %v1061
          %v1075 = vadd.f32 %v1055, %v1065
          %vm1076 = vcmp.gt.f32.partialorder %v1068, 0.0
          %vm1077 = vcmp.gt.f32.partialorder %v1069, 0.0
          %vm1078 = vcmp.gt.f32.partialorder %v1070, 0.0
          %vm1079 = vcmp.gt.f32.partialorder %v1071, 0.0
          %vm1080 = vcmp.gt.f32.partialorder %v1072, 0.0
          %vm1081 = vcmp.gt.f32.partialorder %v1073, 0.0
          %vm1082 = vcmp.gt.f32.partialorder %v1074, 0.0
          %vm1083 = vcmp.gt.f32.partialorder %v1075, 0.0
          %v1084 = vmul.f32 %v1068, 0.2
          %v1085 = vmul.f32 %v1069, 0.2
          %v1086 = vmul.f32 %v1070, 0.2
          %v1087 = vmul.f32 %v1071, 0.2
          %v1088 = vmul.f32 %v1072, 0.2
          %v1089 = vmul.f32 %v1073, 0.2
          %v1090 = vmul.f32 %v1074, 0.2
          %v1091 = vmul.f32 %v1075, 0.2
          %v1092 = vsel %vm1076, %v1068, %v1084
          %v1093 = vsel %vm1077, %v1069, %v1085
          %v1094 = vsel %vm1078, %v1070, %v1086
          %v1095 = vsel %vm1079, %v1071, %v1087
          %v1096 = vsel %vm1080, %v1072, %v1088
          %v1097 = vsel %vm1081, %v1073, %v1089
          %v1098 = vsel %vm1082, %v1074, %v1090
          %v1099 = vsel %vm1083, %v1075, %v1091
          %v1100 = vpack.c.bf16 %v1094, %v1092
          %v1101 = vpack.c.bf16 %v1095, %v1093
          %v1102 = vpack.c.bf16 %v1098, %v1096
          %v1103 = vpack.c.bf16 %v1099, %v1097
          %v1104 = vld [vmem:[#allocation12] sm:$0xff]
          %v1105 = vld [vmem:[#allocation12 + $0x8] sm:$0xff]
          %v1106 = vld [vmem:[#allocation12 + $0x10] sm:$0xff]
          %v1107 = vld [vmem:[#allocation12 + $0x18] sm:$0xff]
          %v1108 = vld [vmem:[#allocation12 + $0x20] sm:$0xff]
          %v1109 = vld [vmem:[#allocation12 + $0x28] sm:$0xff]
          %v1110 = vld [vmem:[#allocation12 + $0x30] sm:$0xff]
          %v1111 = vld [vmem:[#allocation12 + $0x38] sm:$0xff]
          %v1112 = vld [vmem:[#allocation12 + $0x40] sm:$0xff]
          %v1113 = vld [vmem:[#allocation12 + $0x48] sm:$0xff]
          %v1114 = vld [vmem:[#allocation12 + $0x50] sm:$0xff]
          %v1115 = vld [vmem:[#allocation12 + $0x58] sm:$0xff]
          %v1116 = vld [vmem:[#allocation12 + $0x60] sm:$0xff]
          %v1117 = vld [vmem:[#allocation12 + $0x68] sm:$0xff]
          %v1118 = vld [vmem:[#allocation12 + $0x70] sm:$0xff]
          %v1119 = vld [vmem:[#allocation12 + $0x78] sm:$0xff]
          %v1120 = vld [vmem:[#allocation12 + $0x80] sm:$0xff]
          %v1121 = vld [vmem:[#allocation12 + $0x88] sm:$0xff]
          %v1122 = vld [vmem:[#allocation12 + $0x90] sm:$0xff]
          %v1123 = vld [vmem:[#allocation12 + $0x98] sm:$0xff]
          %v1124 = vld [vmem:[#allocation12 + $0xa0] sm:$0xff]
          %v1125 = vld [vmem:[#allocation12 + $0xa8] sm:$0xff]
          %v1126 = vld [vmem:[#allocation12 + $0xb0] sm:$0xff]
          %v1127 = vld [vmem:[#allocation12 + $0xb8] sm:$0xff]
          %v1128 = vld [vmem:[#allocation12 + $0xc0] sm:$0xff]
          %v1129 = vld [vmem:[#allocation12 + $0xc8] sm:$0xff]
          %v1130 = vld [vmem:[#allocation12 + $0xd0] sm:$0xff]
          %v1131 = vld [vmem:[#allocation12 + $0xd8] sm:$0xff]
          %v1132 = vld [vmem:[#allocation12 + $0xe0] sm:$0xff]
          %v1133 = vld [vmem:[#allocation12 + $0xe8] sm:$0xff]
          %v1134 = vld [vmem:[#allocation12 + $0xf0] sm:$0xff]
          %v1135 = vld [vmem:[#allocation12 + $0xf8] sm:$0xff]
          %v1136 = vld [vmem:[#allocation12 + $0x100] sm:$0xff]
          %v1137 = vld [vmem:[#allocation12 + $0x108] sm:$0xff]
          %v1138 = vld [vmem:[#allocation12 + $0x110] sm:$0xff]
          %v1139 = vld [vmem:[#allocation12 + $0x118] sm:$0xff]
          %v1140 = vld [vmem:[#allocation12 + $0x120] sm:$0xff]
          %v1141 = vld [vmem:[#allocation12 + $0x128] sm:$0xff]
          %v1142 = vld [vmem:[#allocation12 + $0x130] sm:$0xff]
          %v1143 = vld [vmem:[#allocation12 + $0x138] sm:$0xff]
          %v1144 = vld [vmem:[#allocation12 + $0x140] sm:$0xff]
          %v1145 = vld [vmem:[#allocation12 + $0x148] sm:$0xff]
          %v1146 = vld [vmem:[#allocation12 + $0x150] sm:$0xff]
          %v1147 = vld [vmem:[#allocation12 + $0x158] sm:$0xff]
          %v1148 = vld [vmem:[#allocation12 + $0x160] sm:$0xff]
          %v1149 = vld [vmem:[#allocation12 + $0x168] sm:$0xff]
          %v1150 = vld [vmem:[#allocation12 + $0x170] sm:$0xff]
          %v1151 = vld [vmem:[#allocation12 + $0x178] sm:$0xff]
          %v1152 = vld [vmem:[#allocation12 + $0x180] sm:$0xff]
          %v1153 = vld [vmem:[#allocation12 + $0x188] sm:$0xff]
          %v1154 = vld [vmem:[#allocation12 + $0x190] sm:$0xff]
          %v1155 = vld [vmem:[#allocation12 + $0x198] sm:$0xff]
          %v1156 = vld [vmem:[#allocation12 + $0x1a0] sm:$0xff]
          %v1157 = vld [vmem:[#allocation12 + $0x1a8] sm:$0xff]
          %v1158 = vld [vmem:[#allocation12 + $0x1b0] sm:$0xff]
          %v1159 = vld [vmem:[#allocation12 + $0x1b8] sm:$0xff]
          %v1160 = vld [vmem:[#allocation12 + $0x1c0] sm:$0xff]
          %v1161 = vld [vmem:[#allocation12 + $0x1c8] sm:$0xff]
          %v1162 = vld [vmem:[#allocation12 + $0x1d0] sm:$0xff]
          %v1163 = vld [vmem:[#allocation12 + $0x1d8] sm:$0xff]
          %v1164 = vld [vmem:[#allocation12 + $0x1e0] sm:$0xff]
          %v1165 = vld [vmem:[#allocation12 + $0x1e8] sm:$0xff]
          %v1166 = vld [vmem:[#allocation12 + $0x1f0] sm:$0xff]
          %v1167 = vld [vmem:[#allocation12 + $0x1f8] sm:$0xff]
          %v1232 = vunpack.c.l.b16 %v1104
          %v1233 = vunpack.c.h.b16 %v1104
          %v1234 = vunpack.c.l.b16 %v1105
          %v1235 = vunpack.c.h.b16 %v1105
          %v1236 = vunpack.c.l.b16 %v1106
          %v1237 = vunpack.c.h.b16 %v1106
          %v1238 = vunpack.c.l.b16 %v1107
          %v1239 = vunpack.c.h.b16 %v1107
          %v1240 = vunpack.c.l.b16 %v1108
          %v1241 = vunpack.c.h.b16 %v1108
          %v1242 = vunpack.c.l.b16 %v1109
          %v1243 = vunpack.c.h.b16 %v1109
          %v1244 = vunpack.c.l.b16 %v1110
          %v1245 = vunpack.c.h.b16 %v1110
          %v1246 = vunpack.c.l.b16 %v1111
          %v1247 = vunpack.c.h.b16 %v1111
          %v1248 = vunpack.c.l.b16 %v1112
          %v1249 = vunpack.c.h.b16 %v1112
          %v1250 = vunpack.c.l.b16 %v1113
          %v1251 = vunpack.c.h.b16 %v1113
          %v1252 = vunpack.c.l.b16 %v1114
          %v1253 = vunpack.c.h.b16 %v1114
          %v1254 = vunpack.c.l.b16 %v1115
          %v1255 = vunpack.c.h.b16 %v1115
          %v1256 = vunpack.c.l.b16 %v1116
          %v1257 = vunpack.c.h.b16 %v1116
          %v1258 = vunpack.c.l.b16 %v1117
          %v1259 = vunpack.c.h.b16 %v1117
          %v1260 = vunpack.c.l.b16 %v1118
          %v1261 = vunpack.c.h.b16 %v1118
          %v1262 = vunpack.c.l.b16 %v1119
          %v1263 = vunpack.c.h.b16 %v1119
          %v1264 = vunpack.c.l.b16 %v1120
          %v1265 = vunpack.c.h.b16 %v1120
          %v1266 = vunpack.c.l.b16 %v1121
          %v1267 = vunpack.c.h.b16 %v1121
          %v1268 = vunpack.c.l.b16 %v1122
          %v1269 = vunpack.c.h.b16 %v1122
          %v1270 = vunpack.c.l.b16 %v1123
          %v1271 = vunpack.c.h.b16 %v1123
          %v1272 = vunpack.c.l.b16 %v1124
          %v1273 = vunpack.c.h.b16 %v1124
          %v1274 = vunpack.c.l.b16 %v1125
          %v1275 = vunpack.c.h.b16 %v1125
          %v1276 = vunpack.c.l.b16 %v1126
          %v1277 = vunpack.c.h.b16 %v1126
          %v1278 = vunpack.c.l.b16 %v1127
          %v1279 = vunpack.c.h.b16 %v1127
          %v1280 = vunpack.c.l.b16 %v1128
          %v1281 = vunpack.c.h.b16 %v1128
          %v1282 = vunpack.c.l.b16 %v1129
          %v1283 = vunpack.c.h.b16 %v1129
          %v1284 = vunpack.c.l.b16 %v1130
          %v1285 = vunpack.c.h.b16 %v1130
          %v1286 = vunpack.c.l.b16 %v1131
          %v1287 = vunpack.c.h.b16 %v1131
          %v1288 = vunpack.c.l.b16 %v1132
          %v1289 = vunpack.c.h.b16 %v1132
          %v1290 = vunpack.c.l.b16 %v1133
          %v1291 = vunpack.c.h.b16 %v1133
          %v1292 = vunpack.c.l.b16 %v1134
          %v1293 = vunpack.c.h.b16 %v1134
          %v1294 = vunpack.c.l.b16 %v1135
          %v1295 = vunpack.c.h.b16 %v1135
          %v1296 = vunpack.c.l.b16 %v1136
          %v1297 = vunpack.c.h.b16 %v1136
          %v1298 = vunpack.c.l.b16 %v1137
          %v1299 = vunpack.c.h.b16 %v1137
          %v1300 = vunpack.c.l.b16 %v1138
          %v1301 = vunpack.c.h.b16 %v1138
          %v1302 = vunpack.c.l.b16 %v1139
          %v1303 = vunpack.c.h.b16 %v1139
          %v1304 = vunpack.c.l.b16 %v1140
          %v1305 = vunpack.c.h.b16 %v1140
          %v1306 = vunpack.c.l.b16 %v1141
          %v1307 = vunpack.c.h.b16 %v1141
          %v1308 = vunpack.c.l.b16 %v1142
          %v1309 = vunpack.c.h.b16 %v1142
          %v1310 = vunpack.c.l.b16 %v1143
          %v1311 = vunpack.c.h.b16 %v1143
          %v1312 = vunpack.c.l.b16 %v1144
          %v1313 = vunpack.c.h.b16 %v1144
          %v1314 = vunpack.c.l.b16 %v1145
          %v1315 = vunpack.c.h.b16 %v1145
          %v1316 = vunpack.c.l.b16 %v1146
          %v1317 = vunpack.c.h.b16 %v1146
          %v1318 = vunpack.c.l.b16 %v1147
          %v1319 = vunpack.c.h.b16 %v1147
          %v1320 = vunpack.c.l.b16 %v1148
          %v1321 = vunpack.c.h.b16 %v1148
          %v1322 = vunpack.c.l.b16 %v1149
          %v1323 = vunpack.c.h.b16 %v1149
          %v1324 = vunpack.c.l.b16 %v1150
          %v1325 = vunpack.c.h.b16 %v1150
          %v1326 = vunpack.c.l.b16 %v1151
          %v1327 = vunpack.c.h.b16 %v1151
          %v1328 = vunpack.c.l.b16 %v1152
          %v1329 = vunpack.c.h.b16 %v1152
          %v1330 = vunpack.c.l.b16 %v1153
          %v1331 = vunpack.c.h.b16 %v1153
          %v1332 = vunpack.c.l.b16 %v1154
          %v1333 = vunpack.c.h.b16 %v1154
          %v1334 = vunpack.c.l.b16 %v1155
          %v1335 = vunpack.c.h.b16 %v1155
          %v1336 = vunpack.c.l.b16 %v1156
          %v1337 = vunpack.c.h.b16 %v1156
          %v1338 = vunpack.c.l.b16 %v1157
          %v1339 = vunpack.c.h.b16 %v1157
          %v1340 = vunpack.c.l.b16 %v1158
          %v1341 = vunpack.c.h.b16 %v1158
          %v1342 = vunpack.c.l.b16 %v1159
          %v1343 = vunpack.c.h.b16 %v1159
          %v1344 = vunpack.c.l.b16 %v1160
          %v1345 = vunpack.c.h.b16 %v1160
          %v1346 = vunpack.c.l.b16 %v1161
          %v1347 = vunpack.c.h.b16 %v1161
          %v1348 = vunpack.c.l.b16 %v1162
          %v1349 = vunpack.c.h.b16 %v1162
          %v1350 = vunpack.c.l.b16 %v1163
          %v1351 = vunpack.c.h.b16 %v1163
          %v1352 = vunpack.c.l.b16 %v1164
          %v1353 = vunpack.c.h.b16 %v1164
          %v1354 = vunpack.c.l.b16 %v1165
          %v1355 = vunpack.c.h.b16 %v1165
          %v1356 = vunpack.c.l.b16 %v1166
          %v1357 = vunpack.c.h.b16 %v1166
          %v1358 = vunpack.c.l.b16 %v1167
          %v1359 = vunpack.c.h.b16 %v1167
          %v1360 = vpack.c.b16 %v1236, %v1232
          %v1361 = vpack.c.b16 %v1237, %v1233
          %v1362 = vpack.c.b16 %v1238, %v1234
          %v1363 = vpack.c.b16 %v1239, %v1235
          %v1364 = vpack.c.b16 %v1244, %v1240
          %v1365 = vpack.c.b16 %v1245, %v1241
          %v1366 = vpack.c.b16 %v1246, %v1242
          %v1367 = vpack.c.b16 %v1247, %v1243
          %v1368 = vpack.c.b16 %v1252, %v1248
          %v1369 = vpack.c.b16 %v1253, %v1249
          %v1370 = vpack.c.b16 %v1254, %v1250
          %v1371 = vpack.c.b16 %v1255, %v1251
          %v1372 = vpack.c.b16 %v1260, %v1256
          %v1373 = vpack.c.b16 %v1261, %v1257
          %v1374 = vpack.c.b16 %v1262, %v1258
          %v1375 = vpack.c.b16 %v1263, %v1259
          %v1376 = vpack.c.b16 %v1268, %v1264
          %v1377 = vpack.c.b16 %v1269, %v1265
          %v1378 = vpack.c.b16 %v1270, %v1266
          %v1379 = vpack.c.b16 %v1271, %v1267
          %v1380 = vpack.c.b16 %v1276, %v1272
          %v1381 = vpack.c.b16 %v1277, %v1273
          %v1382 = vpack.c.b16 %v1278, %v1274
          %v1383 = vpack.c.b16 %v1279, %v1275
          %v1384 = vpack.c.b16 %v1284, %v1280
          %v1385 = vpack.c.b16 %v1285, %v1281
          %v1386 = vpack.c.b16 %v1286, %v1282
          %v1387 = vpack.c.b16 %v1287, %v1283
          %v1388 = vpack.c.b16 %v1292, %v1288
          %v1389 = vpack.c.b16 %v1293, %v1289
          %v1390 = vpack.c.b16 %v1294, %v1290
          %v1391 = vpack.c.b16 %v1295, %v1291
          %v1392 = vpack.c.b16 %v1300, %v1296
          %v1393 = vpack.c.b16 %v1301, %v1297
          %v1394 = vpack.c.b16 %v1302, %v1298
          %v1395 = vpack.c.b16 %v1303, %v1299
          %v1396 = vpack.c.b16 %v1308, %v1304
          %v1397 = vpack.c.b16 %v1309, %v1305
          %v1398 = vpack.c.b16 %v1310, %v1306
          %v1399 = vpack.c.b16 %v1311, %v1307
          %v1400 = vpack.c.b16 %v1316, %v1312
          %v1401 = vpack.c.b16 %v1317, %v1313
          %v1402 = vpack.c.b16 %v1318, %v1314
          %v1403 = vpack.c.b16 %v1319, %v1315
          %v1404 = vpack.c.b16 %v1324, %v1320
          %v1405 = vpack.c.b16 %v1325, %v1321
          %v1406 = vpack.c.b16 %v1326, %v1322
          %v1407 = vpack.c.b16 %v1327, %v1323
          %v1408 = vpack.c.b16 %v1332, %v1328
          %v1409 = vpack.c.b16 %v1333, %v1329
          %v1410 = vpack.c.b16 %v1334, %v1330
          %v1411 = vpack.c.b16 %v1335, %v1331
          %v1412 = vpack.c.b16 %v1340, %v1336
          %v1413 = vpack.c.b16 %v1341, %v1337
          %v1414 = vpack.c.b16 %v1342, %v1338
          %v1415 = vpack.c.b16 %v1343, %v1339
          %v1416 = vpack.c.b16 %v1348, %v1344
          %v1417 = vpack.c.b16 %v1349, %v1345
          %v1418 = vpack.c.b16 %v1350, %v1346
          %v1419 = vpack.c.b16 %v1351, %v1347
          %v1420 = vpack.c.b16 %v1356, %v1352
          %v1421 = vpack.c.b16 %v1357, %v1353
          %v1422 = vpack.c.b16 %v1358, %v1354
          %v1423 = vpack.c.b16 %v1359, %v1355
          %1488 = vmatprep.subr.bf16.mxu0 %v1361
          %1489 = vmatpush1.bf16.msra.mxu0 %v1360
          %1490 = vmatprep.subr.bf16.mxu0 %v1365
          %1491 = vmatpush1.bf16.msra.mxu0 %v1364
          %1492 = vmatprep.subr.bf16.mxu0 %v1369
          %1493 = vmatpush1.bf16.msra.mxu0 %v1368
          %1494 = vmatprep.subr.bf16.mxu0 %v1373
          %1495 = vmatpush1.bf16.msra.mxu0 %v1372
          %1496 = vmatprep.subr.bf16.mxu0 %v1377
          %1497 = vmatpush1.bf16.msra.mxu0 %v1376
          %1498 = vmatprep.subr.bf16.mxu0 %v1381
          %1499 = vmatpush1.bf16.msra.mxu0 %v1380
          %1500 = vmatprep.subr.bf16.mxu0 %v1385
          %1501 = vmatpush1.bf16.msra.mxu0 %v1384
          %1502 = vmatprep.subr.bf16.mxu0 %v1389
          %1503 = vmatpush1.bf16.msra.mxu0 %v1388
          %1504 = vmatprep.subr.bf16.mxu0 %v1393
          %1505 = vmatpush1.bf16.msra.mxu0 %v1392
          %1506 = vmatprep.subr.bf16.mxu0 %v1397
          %1507 = vmatpush1.bf16.msra.mxu0 %v1396
          %1508 = vmatprep.subr.bf16.mxu0 %v1401
          %1509 = vmatpush1.bf16.msra.mxu0 %v1400
          %1510 = vmatprep.subr.bf16.mxu0 %v1405
          %1511 = vmatpush1.bf16.msra.mxu0 %v1404
          %1512 = vmatprep.subr.bf16.mxu0 %v1409
          %1513 = vmatpush1.bf16.msra.mxu0 %v1408
          %1514 = vmatprep.subr.bf16.mxu0 %v1413
          %1515 = vmatpush1.bf16.msra.mxu0 %v1412
          %1516 = vmatprep.subr.bf16.mxu0 %v1417
          %1517 = vmatpush1.bf16.msra.mxu0 %v1416
          %1518 = vmatprep.subr.bf16.mxu0 %v1421
          %1519 = vmatpush1.bf16.msra.mxu0 %v1420
          %1520 = vmatprep.mubr.bf16.mxu0 %v1101
          %1521 = vmatmul.mubr.bf16.gmra.mrb[0].mxu0 %v1100
          %v1522 = vpop.f32.mrb[0].mxu0
          %v1523 = vadd.f32 0.0, %v1522
          %v1524 = vpop.f32.mrb[0].mxu0
          %v1525 = vadd.f32 0.0, %v1524
          %v1526 = vpop.f32.mrb[0].mxu0
          %v1527 = vadd.f32 0.0, %v1526
          %v1528 = vpop.f32.mrb[0].mxu0
          %v1529 = vadd.f32 0.0, %v1528
          %1530 = vmatprep.mubr.bf16.mxu0 %v1103
          %1531 = vmatmul.mubr.bf16.gmra.mrb[0].mxu0 %v1102
          %v1532 = vpop.f32.mrb[0].mxu0
          %v1533 = vadd.f32 0.0, %v1532
          %v1534 = vpop.f32.mrb[0].mxu0
          %v1535 = vadd.f32 0.0, %v1534
          %v1536 = vpop.f32.mrb[0].mxu0
          %v1537 = vadd.f32 0.0, %v1536
          %v1538 = vpop.f32.mrb[0].mxu0
          %v1539 = vadd.f32 0.0, %v1538
          %1540 = vdwg.mxu0
          %1541 = vmatprep.subr.bf16.mxu0 %v1363
          %1542 = vmatpush1.bf16.msra.mxu0 %v1362
          %1543 = vmatprep.subr.bf16.mxu0 %v1367
          %1544 = vmatpush1.bf16.msra.mxu0 %v1366
          %1545 = vmatprep.subr.bf16.mxu0 %v1371
          %1546 = vmatpush1.bf16.msra.mxu0 %v1370
          %1547 = vmatprep.subr.bf16.mxu0 %v1375
          %1548 = vmatpush1.bf16.msra.mxu0 %v1374
          %1549 = vmatprep.subr.bf16.mxu0 %v1379
          %1550 = vmatpush1.bf16.msra.mxu0 %v1378
          %1551 = vmatprep.subr.bf16.mxu0 %v1383
          %1552 = vmatpush1.bf16.msra.mxu0 %v1382
          %1553 = vmatprep.subr.bf16.mxu0 %v1387
          %1554 = vmatpush1.bf16.msra.mxu0 %v1386
          %1555 = vmatprep.subr.bf16.mxu0 %v1391
          %1556 = vmatpush1.bf16.msra.mxu0 %v1390
          %1557 = vmatprep.subr.bf16.mxu0 %v1395
          %1558 = vmatpush1.bf16.msra.mxu0 %v1394
          %1559 = vmatprep.subr.bf16.mxu0 %v1399
          %1560 = vmatpush1.bf16.msra.mxu0 %v1398
          %1561 = vmatprep.subr.bf16.mxu0 %v1403
          %1562 = vmatpush1.bf16.msra.mxu0 %v1402
          %1563 = vmatprep.subr.bf16.mxu0 %v1407
          %1564 = vmatpush1.bf16.msra.mxu0 %v1406
          %1565 = vmatprep.subr.bf16.mxu0 %v1411
          %1566 = vmatpush1.bf16.msra.mxu0 %v1410
          %1567 = vmatprep.subr.bf16.mxu0 %v1415
          %1568 = vmatpush1.bf16.msra.mxu0 %v1414
          %1569 = vmatprep.subr.bf16.mxu0 %v1419
          %1570 = vmatpush1.bf16.msra.mxu0 %v1418
          %1571 = vmatprep.subr.bf16.mxu0 %v1423
          %1572 = vmatpush1.bf16.msra.mxu0 %v1422
          %1573 = vmatprep.mubr.bf16.mxu0 %v1101
          %1574 = vmatmul.mubr.bf16.gmra.mrb[0].mxu0 %v1100
          %v1575 = vpop.f32.mrb[0].mxu0
          %v1576 = vadd.f32 0.0, %v1575
          %v1577 = vpop.f32.mrb[0].mxu0
          %v1578 = vadd.f32 0.0, %v1577
          %v1579 = vpop.f32.mrb[0].mxu0
          %v1580 = vadd.f32 0.0, %v1579
          %v1581 = vpop.f32.mrb[0].mxu0
          %v1582 = vadd.f32 0.0, %v1581
          %1583 = vmatprep.mubr.bf16.mxu0 %v1103
          %1584 = vmatmul.mubr.bf16.gmra.mrb[0].mxu0 %v1102
          %v1585 = vpop.f32.mrb[0].mxu0
          %v1586 = vadd.f32 0.0, %v1585
          %v1587 = vpop.f32.mrb[0].mxu0
          %v1588 = vadd.f32 0.0, %v1587
          %v1589 = vpop.f32.mrb[0].mxu0
          %v1590 = vadd.f32 0.0, %v1589
          %v1591 = vpop.f32.mrb[0].mxu0
          %v1592 = vadd.f32 0.0, %v1591
          %1593 = vdwg.mxu0
          %s1594 = smul.u32 %s32, 32
          %v1595 = vlaneseq
          %v1596 = vshrl.u32 %v1595, 7
          %v1597 = vadd.s32 %v1596, 8
          %v1598 = vadd.s32 %v1596, 16
          %v1599 = vadd.s32 %v1596, 24
          %v1600 = vstv %s1594
          %v1601 = vadd.s32 %v1600, %v1596
          %v1602 = vadd.s32 %v1600, %v1597
          %v1603 = vadd.s32 %v1600, %v1598
          %v1604 = vadd.s32 %v1600, %v1599
          %vm1605 = vcmp.lt.s32.totalorder %v1601, 80
          %vm1606 = vcmp.lt.s32.totalorder %v1602, 80
          %vm1607 = vcmp.lt.s32.totalorder %v1603, 80
          %vm1608 = vcmp.lt.s32.totalorder %v1604, 80
          %v1609 = vsel %vm1605, 1, 0
          %v1610 = vsel %vm1606, 1, 0
          %v1611 = vsel %vm1607, 1, 0
          %v1612 = vsel %vm1608, 1, 0
          %vm1613 = vcmp.eq.s32.totalorder %v1609, 1
          %vm1614 = vcmp.eq.s32.totalorder %v1610, 1
          %vm1615 = vcmp.eq.s32.totalorder %v1611, 1
          %vm1616 = vcmp.eq.s32.totalorder %v1612, 1
          %v1617 = vsel %vm1613, %v1523, 0.0
          %v1618 = vsel %vm1613, %v1525, 0.0
          %v1619 = vsel %vm1613, %v1576, 0.0
          %v1620 = vsel %vm1613, %v1578, 0.0
          %v1621 = vsel %vm1614, %v1527, 0.0
          %v1622 = vsel %vm1614, %v1529, 0.0
          %v1623 = vsel %vm1614, %v1580, 0.0
          %v1624 = vsel %vm1614, %v1582, 0.0
          %v1625 = vsel %vm1615, %v1533, 0.0
          %v1626 = vsel %vm1615, %v1535, 0.0
          %v1627 = vsel %vm1615, %v1586, 0.0
          %v1628 = vsel %vm1615, %v1588, 0.0
          %v1629 = vsel %vm1616, %v1537, 0.0
          %v1630 = vsel %vm1616, %v1539, 0.0
          %v1631 = vsel %vm1616, %v1590, 0.0
          %v1632 = vsel %vm1616, %v1592, 0.0
          %v1633 = vld [vmem:[#allocation4] sm:$0xf]
          %v1634 = vadd.f32 %v1617, %v1621
          %v1635 = vadd.f32 %v1634, %v1625
          %v1636 = vadd.f32 %v1635, %v1629
          %v1637 = vrot.slane %v1636, 4
          %v1638 = vadd.f32 %v1636, %v1637
          %v1639 = vrot.slane %v1638, 2
          %v1640 = vadd.f32 %v1638, %v1639
          %v1641 = vrot.slane %v1640, 1
          %v1642 = vadd.f32 %v1640, %v1641
          %v1643 = vadd.f32 %v1618, %v1622
          %v1644 = vadd.f32 %v1643, %v1626
          %v1645 = vadd.f32 %v1644, %v1630
          %v1646 = vrot.slane %v1645, 4
          %v1647 = vadd.f32 %v1645, %v1646
          %v1648 = vrot.slane %v1647, 2
          %v1649 = vadd.f32 %v1647, %v1648
          %v1650 = vrot.slane %v1649, 1
          %v1651 = vadd.f32 %v1649, %v1650
          %v1652 = vadd.f32 %v1619, %v1623
          %v1653 = vadd.f32 %v1652, %v1627
          %v1654 = vadd.f32 %v1653, %v1631
          %v1655 = vrot.slane %v1654, 4
          %v1656 = vadd.f32 %v1654, %v1655
          %v1657 = vrot.slane %v1656, 2
          %v1658 = vadd.f32 %v1656, %v1657
          %v1659 = vrot.slane %v1658, 1
          %v1660 = vadd.f32 %v1658, %v1659
          %v1661 = vadd.f32 %v1620, %v1624
          %v1662 = vadd.f32 %v1661, %v1628
          %v1663 = vadd.f32 %v1662, %v1632
          %v1664 = vrot.slane %v1663, 4
          %v1665 = vadd.f32 %v1663, %v1664
          %v1666 = vrot.slane %v1665, 2
          %v1667 = vadd.f32 %v1665, %v1666
          %v1668 = vrot.slane %v1667, 1
          %v1669 = vadd.f32 %v1667, %v1668
          %v1674 = vcombine.low %v1642, %v1651
          %v1675 = vcombine.low %v1660, %v1669
          %v1677 = vunpack.c.l.s4 1966171168
          %v1678 = vunpack.c.0.s8 %v1677
          %v1679 = vlaneseq
          %v1680 = vshrl.u32 %v1679, 7
          %v1681 = vsub.s32 %v1678, %v1680
          %v1682 = vrot.slane %v1674, %v1681
          %v1684 = vunpack.c.l.s4 1966171168
          %v1685 = vunpack.c.0.s8 %v1684
          %v1686 = vlaneseq
          %v1687 = vshrl.u32 %v1686, 7
          %v1688 = vsub.s32 %v1685, %v1687
          %v1689 = vrot.slane %v1675, %v1688
          %v1690 = vcombine.low %v1682, %v1689
          %v1692 = vunpack.c.l.s4 1966171168
          %v1693 = vunpack.c.0.s8 %v1692
          %v1694 = vlaneseq
          %v1695 = vshrl.u32 %v1694, 7
          %v1696 = vsub.s32 %v1693, %v1695
          %v1697 = vrot.slane %v1690, %v1696
          %v1699 = vadd.f32 %v1633, %v1697
          %v1700 = vlaneseq
          %vm1701 = vcmp.ge.s32.totalorder %v1700, 0
          %vm1702 = vcmp.lt.s32.totalorder %v1700, 512
          %vm1703 = vmand %vm1701, %vm1702
          %1704 = vst.msk [vmem:[#allocation4] sm:$0xf] %vm1703, %v1699
          %v1705 = vld [vmem:[#allocation5] sm:$0xf]
          %v1706 = vmul.f32 %v1617, %v1617
          %v1707 = vmul.f32 %v1618, %v1618
          %v1708 = vmul.f32 %v1619, %v1619
          %v1709 = vmul.f32 %v1620, %v1620
          %v1710 = vmul.f32 %v1621, %v1621
          %v1711 = vmul.f32 %v1622, %v1622
          %v1712 = vmul.f32 %v1623, %v1623
          %v1713 = vmul.f32 %v1624, %v1624
          %v1714 = vmul.f32 %v1625, %v1625
          %v1715 = vmul.f32 %v1626, %v1626
          %v1716 = vmul.f32 %v1627, %v1627
          %v1717 = vmul.f32 %v1628, %v1628
          %v1718 = vmul.f32 %v1629, %v1629
          %v1719 = vmul.f32 %v1630, %v1630
          %v1720 = vmul.f32 %v1631, %v1631
          %v1721 = vmul.f32 %v1632, %v1632
          %v1722 = vadd.f32 %v1706, %v1710
          %v1723 = vadd.f32 %v1722, %v1714
          %v1724 = vadd.f32 %v1723, %v1718
          %v1725 = vrot.slane %v1724, 4
          %v1726 = vadd.f32 %v1724, %v1725
          %v1727 = vrot.slane %v1726, 2
          %v1728 = vadd.f32 %v1726, %v1727
          %v1729 = vrot.slane %v1728, 1
          %v1730 = vadd.f32 %v1728, %v1729
          %v1731 = vadd.f32 %v1707, %v1711
          %v1732 = vadd.f32 %v1731, %v1715
          %v1733 = vadd.f32 %v1732, %v1719
          %v1734 = vrot.slane %v1733, 4
          %v1735 = vadd.f32 %v1733, %v1734
          %v1736 = vrot.slane %v1735, 2
          %v1737 = vadd.f32 %v1735, %v1736
          %v1738 = vrot.slane %v1737, 1
          %v1739 = vadd.f32 %v1737, %v1738
          %v1740 = vadd.f32 %v1708, %v1712
          %v1741 = vadd.f32 %v1740, %v1716
          %v1742 = vadd.f32 %v1741, %v1720
          %v1743 = vrot.slane %v1742, 4
          %v1744 = vadd.f32 %v1742, %v1743
          %v1745 = vrot.slane %v1744, 2
          %v1746 = vadd.f32 %v1744, %v1745
          %v1747 = vrot.slane %v1746, 1
          %v1748 = vadd.f32 %v1746, %v1747
          %v1749 = vadd.f32 %v1709, %v1713
          %v1750 = vadd.f32 %v1749, %v1717
          %v1751 = vadd.f32 %v1750, %v1721
          %v1752 = vrot.slane %v1751, 4
          %v1753 = vadd.f32 %v1751, %v1752
          %v1754 = vrot.slane %v1753, 2
          %v1755 = vadd.f32 %v1753, %v1754
          %v1756 = vrot.slane %v1755, 1
          %v1757 = vadd.f32 %v1755, %v1756
          %v1762 = vcombine.low %v1730, %v1739
          %v1763 = vcombine.low %v1748, %v1757
          %v1765 = vunpack.c.l.s4 1966171168
          %v1766 = vunpack.c.0.s8 %v1765
          %v1767 = vlaneseq
          %v1768 = vshrl.u32 %v1767, 7
          %v1769 = vsub.s32 %v1766, %v1768
          %v1770 = vrot.slane %v1762, %v1769
          %v1772 = vunpack.c.l.s4 1966171168
          %v1773 = vunpack.c.0.s8 %v1772
          %v1774 = vlaneseq
          %v1775 = vshrl.u32 %v1774, 7
          %v1776 = vsub.s32 %v1773, %v1775
          %v1777 = vrot.slane %v1763, %v1776
          %v1778 = vcombine.low %v1770, %v1777
          %v1780 = vunpack.c.l.s4 1966171168
          %v1781 = vunpack.c.0.s8 %v1780
          %v1782 = vlaneseq
          %v1783 = vshrl.u32 %v1782, 7
          %v1784 = vsub.s32 %v1781, %v1783
          %v1785 = vrot.slane %v1778, %v1784
          %v1787 = vadd.f32 %v1705, %v1785
          %1788 = vst.msk [vmem:[#allocation5] sm:$0xf] %vm1703, %v1787
          %vm1789 = vcmask 7168
          %1790 = vst.msk [vmem:[%s410] sm:$0xff] %vm1789, 0.0
          %1791 = vst.msk [vmem:[%s410 + $0x8] sm:$0xff] %vm1789, 0.0
          %1792 = vst.msk [vmem:[%s410 + $0x10] sm:$0xff] %vm1789, 0.0
          %1793 = vst.msk [vmem:[%s410 + $0x18] sm:$0xff] %vm1789, 0.0
        $region88: #{tpu_custom_call.1} parent=55 // pred_fallthru
          _
        %p1794 = scmp.eq.s32.totalorder %s31, 2
        // Predicated region
        $region89: #{tpu_custom_call.1} parent=55 // pred_check
          %p1795 = pneg %p1794
        $region90: #{tpu_custom_call.1} parent=55 // pred_check_branch
          %1797 = sbr.rel (%p1795) target = $region92
        $region91: #{tpu_custom_call.1} parent=55 // pred_region
          %v1798 = vld [vmem:[%s358] sm:$0xff]
          %v1799 = vld [vmem:[%s358 + $0x8] sm:$0xff]
          %v1800 = vld [vmem:[%s358 + $0x10] sm:$0xff]
          %v1801 = vld [vmem:[%s358 + $0x18] sm:$0xff]
          %v1802 = vld [vmem:[#allocation9] sm:$0xff]
          %v1803 = vld [vmem:[#allocation9 + $0x8] sm:$0xff]
          %v1804 = vld [vmem:[#allocation9 + $0x10] sm:$0xff]
          %v1805 = vld [vmem:[#allocation9 + $0x18] sm:$0xff]
          %v1806 = vld [vmem:[#allocation9 + $0x20] sm:$0xff]
          %v1807 = vld [vmem:[#allocation9 + $0x28] sm:$0xff]
          %v1808 = vld [vmem:[#allocation9 + $0x30] sm:$0xff]
          %v1809 = vld [vmem:[#allocation9 + $0x38] sm:$0xff]
          %v1810 = vld [vmem:[#allocation9 + $0x40] sm:$0xff]
          %v1811 = vld [vmem:[#allocation9 + $0x48] sm:$0xff]
          %v1812 = vld [vmem:[#allocation9 + $0x50] sm:$0xff]
          %v1813 = vld [vmem:[#allocation9 + $0x58] sm:$0xff]
          %v1814 = vld [vmem:[#allocation9 + $0x60] sm:$0xff]
          %v1815 = vld [vmem:[#allocation9 + $0x68] sm:$0xff]
          %v1816 = vld [vmem:[#allocation9 + $0x70] sm:$0xff]
          %v1817 = vld [vmem:[#allocation9 + $0x78] sm:$0xff]
          %v1818 = vld [vmem:[#allocation9 + $0x80] sm:$0xff]
          %v1819 = vld [vmem:[#allocation9 + $0x88] sm:$0xff]
          %v1820 = vld [vmem:[#allocation9 + $0x90] sm:$0xff]
          %v1821 = vld [vmem:[#allocation9 + $0x98] sm:$0xff]
          %v1822 = vld [vmem:[#allocation9 + $0xa0] sm:$0xff]
          %v1823 = vld [vmem:[#allocation9 + $0xa8] sm:$0xff]
          %v1824 = vld [vmem:[#allocation9 + $0xb0] sm:$0xff]
          %v1825 = vld [vmem:[#allocation9 + $0xb8] sm:$0xff]
          %v1830 = vunpack.c.l.b16 %v1798
          %v1831 = vunpack.c.h.b16 %v1798
          %v1832 = vunpack.c.l.b16 %v1799
          %v1833 = vunpack.c.h.b16 %v1799
          %v1834 = vunpack.c.l.b16 %v1800
          %v1835 = vunpack.c.h.b16 %v1800
          %v1836 = vunpack.c.l.b16 %v1801
          %v1837 = vunpack.c.h.b16 %v1801
          %v1838 = vpack.c.b16 %v1832, %v1830
          %v1839 = vpack.c.b16 %v1833, %v1831
          %v1840 = vpack.c.b16 %v1836, %v1834
          %v1841 = vpack.c.b16 %v1837, %v1835
          %v1868 = vunpack.c.l.b16 %v1802
          %v1869 = vunpack.c.h.b16 %v1802
          %v1870 = vunpack.c.l.b16 %v1803
          %v1871 = vunpack.c.h.b16 %v1803
          %v1872 = vunpack.c.l.b16 %v1804
          %v1873 = vunpack.c.h.b16 %v1804
          %v1874 = vunpack.c.l.b16 %v1805
          %v1875 = vunpack.c.h.b16 %v1805
          %v1876 = vunpack.c.l.b16 %v1806
          %v1877 = vunpack.c.h.b16 %v1806
          %v1878 = vunpack.c.l.b16 %v1807
          %v1879 = vunpack.c.h.b16 %v1807
          %v1880 = vunpack.c.l.b16 %v1808
          %v1881 = vunpack.c.h.b16 %v1808
          %v1882 = vunpack.c.l.b16 %v1809
          %v1883 = vunpack.c.h.b16 %v1809
          %v1884 = vunpack.c.l.b16 %v1810
          %v1885 = vunpack.c.h.b16 %v1810
          %v1886 = vunpack.c.l.b16 %v1811
          %v1887 = vunpack.c.h.b16 %v1811
          %v1888 = vunpack.c.l.b16 %v1812
          %v1889 = vunpack.c.h.b16 %v1812
          %v1890 = vunpack.c.l.b16 %v1813
          %v1891 = vunpack.c.h.b16 %v1813
          %v1892 = vunpack.c.l.b16 %v1814
          %v1893 = vunpack.c.h.b16 %v1814
          %v1894 = vunpack.c.l.b16 %v1815
          %v1895 = vunpack.c.h.b16 %v1815
          %v1896 = vunpack.c.l.b16 %v1816
          %v1897 = vunpack.c.h.b16 %v1816
          %v1898 = vunpack.c.l.b16 %v1817
          %v1899 = vunpack.c.h.b16 %v1817
          %v1900 = vunpack.c.l.b16 %v1818
          %v1901 = vunpack.c.h.b16 %v1818
          %v1902 = vunpack.c.l.b16 %v1819
          %v1903 = vunpack.c.h.b16 %v1819
          %v1904 = vunpack.c.l.b16 %v1820
          %v1905 = vunpack.c.h.b16 %v1820
          %v1906 = vunpack.c.l.b16 %v1821
          %v1907 = vunpack.c.h.b16 %v1821
          %v1908 = vunpack.c.l.b16 %v1822
          %v1909 = vunpack.c.h.b16 %v1822
          %v1910 = vunpack.c.l.b16 %v1823
          %v1911 = vunpack.c.h.b16 %v1823
          %v1912 = vunpack.c.l.b16 %v1824
          %v1913 = vunpack.c.h.b16 %v1824
          %v1914 = vunpack.c.l.b16 %v1825
          %v1915 = vunpack.c.h.b16 %v1825
          %v1916 = vpack.c.b16 %v1870, %v1868
          %v1917 = vpack.c.b16 %v1871, %v1869
          %v1918 = vpack.c.b16 %v1874, %v1872
          %v1919 = vpack.c.b16 %v1875, %v1873
          %v1920 = vpack.c.b16 %v1878, %v1876
          %v1921 = vpack.c.b16 %v1879, %v1877
          %v1922 = vpack.c.b16 %v1882, %v1880
          %v1923 = vpack.c.b16 %v1883, %v1881
          %v1924 = vpack.c.b16 %v1886, %v1884
          %v1925 = vpack.c.b16 %v1887, %v1885
          %v1926 = vpack.c.b16 %v1890, %v1888
          %v1927 = vpack.c.b16 %v1891, %v1889
          %v1928 = vpack.c.b16 %v1894, %v1892
          %v1929 = vpack.c.b16 %v1895, %v1893
          %v1930 = vpack.c.b16 %v1898, %v1896
          %v1931 = vpack.c.b16 %v1899, %v1897
          %v1932 = vpack.c.b16 %v1902, %v1900
          %v1933 = vpack.c.b16 %v1903, %v1901
          %v1934 = vpack.c.b16 %v1906, %v1904
          %v1935 = vpack.c.b16 %v1907, %v1905
          %v1936 = vpack.c.b16 %v1910, %v1908
          %v1937 = vpack.c.b16 %v1911, %v1909
          %v1938 = vpack.c.b16 %v1914, %v1912
          %v1939 = vpack.c.b16 %v1915, %v1913
          %vm1964 = vcmask 523264
          %v1966 = vsel %vm1964, %v1839, 0
          %v1969 = vsel %vm1964, %v1841, 0
          %1971 = vmatprep.subr.bf16.mxu0 %v1917
          %1972 = vmatpush1.bf16.msra.mxu0 %v1916
          %1973 = vmatprep.subr.bf16.mxu0 %v1919
          %1974 = vmatpush1.bf16.msra.mxu0 %v1918
          %1975 = vmatprep.subr.bf16.mxu0 %v1921
          %1976 = vmatpush1.bf16.msra.mxu0 %v1920
          %1977 = vmatprep.subr.bf16.mxu0 %v1923
          %1978 = vmatpush1.bf16.msra.mxu0 %v1922
          %1979 = vmatprep.subr.bf16.mxu0 %v1925
          %1980 = vmatpush1.bf16.msra.mxu0 %v1924
          %1981 = vmatprep.subr.bf16.mxu0 %v1927
          %1982 = vmatpush1.bf16.msra.mxu0 %v1926
          %1983 = vmatprep.subr.bf16.mxu0 %v1929
          %1984 = vmatpush1.bf16.msra.mxu0 %v1928
          %1985 = vmatprep.subr.bf16.mxu0 %v1931
          %1986 = vmatpush1.bf16.msra.mxu0 %v1930
          %1987 = vmatprep.subr.bf16.mxu0 %v1933
          %1988 = vmatpush1.bf16.msra.mxu0 %v1932
          %1989 = vmatprep.subr.bf16.mxu0 %v1935
          %1990 = vmatpush1.bf16.msra.mxu0 %v1934
          %1991 = vmatprep.subr.bf16.mxu0 %v1937
          %1992 = vmatpush1.bf16.msra.mxu0 %v1936
          %1993 = vmatprep.subr.bf16.mxu0 %v1939
          %1994 = vmatpush1.bf16.msra.mxu0 %v1938
          %1995 = vmatprep.subr.bf16.mxu0 0
          %1996 = vmatpush1.bf16.msra.mxu0 0
          %1997 = vmatprep.subr.bf16.mxu0 0
          %1998 = vmatpush1.bf16.msra.mxu0 0
          %1999 = vmatprep.subr.bf16.mxu0 0
          %2000 = vmatpush1.bf16.msra.mxu0 0
          %2001 = vmatprep.subr.bf16.mxu0 0
          %2002 = vmatpush1.bf16.msra.mxu0 0
          %2003 = vmatprep.mubr.bf16.mxu0 %v1966
          %2004 = vmatmul.mubr.bf16.gmra.mrb[0].mxu0 %v1838
          %v2005 = vpop.f32.mrb[0].mxu0
          %v2006 = vadd.f32 0.0, %v2005
          %v2007 = vpop.f32.mrb[0].mxu0
          %v2008 = vadd.f32 0.0, %v2007
          %v2009 = vpop.f32.mrb[0].mxu0
          %v2010 = vadd.f32 0.0, %v2009
          %v2011 = vpop.f32.mrb[0].mxu0
          %v2012 = vadd.f32 0.0, %v2011
          %2013 = vmatprep.mubr.bf16.mxu0 %v1969
          %2014 = vmatmul.mubr.bf16.gmra.mrb[0].mxu0 %v1840
          %v2015 = vpop.f32.mrb[0].mxu0
          %v2016 = vadd.f32 0.0, %v2015
          %v2017 = vpop.f32.mrb[0].mxu0
          %v2018 = vadd.f32 0.0, %v2017
          %v2019 = vpop.f32.mrb[0].mxu0
          %v2020 = vadd.f32 0.0, %v2019
          %v2021 = vpop.f32.mrb[0].mxu0
          %v2022 = vadd.f32 0.0, %v2021
          %2023 = vdwg.mxu0
          %v2024 = vld [vmem:[#allocation2] sm:$0x3]
          %v2025 = vmul.f32 %v2024, 0.0125
          %v2026 = vld [vmem:[#allocation3] sm:$0x3]
          %v2027 = vmul.f32 %v2026, 0.0125
          %v2028 = vmul.f32 %v2025, %v2025
          %v2029 = vsub.f32 %v2027, %v2028
          %v2030 = vmax.f32 %v2029, 0.0
          %v2031 = vadd.f32 %v2030, 1e-05
          %v2032 = vrsqrt.pop %v2031
          %v2034 = vlaneseq
          %v2035 = vshrl.u32 %v2034, 7
          %v2036 = vsub.s32 0, %v2035
          %v2037 = vrot.slane %v2025, %v2036
          %v2038 = vlaneseq
          %v2039 = vshrl.u32 %v2038, 7
          %v2040 = vsub.s32 1, %v2039
          %v2041 = vrot.slane %v2025, %v2040
          %v2044 = vsub.f32 %v2006, %v2037
          %v2045 = vsub.f32 %v2008, %v2041
          %v2046 = vsub.f32 %v2010, %v2037
          %v2047 = vsub.f32 %v2012, %v2041
          %v2048 = vsub.f32 %v2016, %v2037
          %v2049 = vsub.f32 %v2018, %v2041
          %v2050 = vsub.f32 %v2020, %v2037
          %v2051 = vsub.f32 %v2022, %v2041
          %v2053 = vlaneseq
          %v2054 = vshrl.u32 %v2053, 7
          %v2055 = vsub.s32 0, %v2054
          %v2056 = vrot.slane %v2032, %v2055
          %v2057 = vlaneseq
          %v2058 = vshrl.u32 %v2057, 7
          %v2059 = vsub.s32 1, %v2058
          %v2060 = vrot.slane %v2032, %v2059
          %v2063 = vmul.f32 %v2044, %v2056
          %v2064 = vmul.f32 %v2045, %v2060
          %v2065 = vmul.f32 %v2046, %v2056
          %v2066 = vmul.f32 %v2047, %v2060
          %v2067 = vmul.f32 %v2048, %v2056
          %v2068 = vmul.f32 %v2049, %v2060
          %v2069 = vmul.f32 %v2050, %v2056
          %v2070 = vmul.f32 %v2051, %v2060
          %v2071 = vld [vmem:[%s2] sm:$0x3]
          %v2073 = vlaneseq
          %v2074 = vshrl.u32 %v2073, 7
          %v2075 = vsub.s32 0, %v2074
          %v2076 = vrot.slane %v2071, %v2075
          %v2077 = vlaneseq
          %v2078 = vshrl.u32 %v2077, 7
          %v2079 = vsub.s32 1, %v2078
          %v2080 = vrot.slane %v2071, %v2079
          %v2083 = vmul.f32 %v2063, %v2076
          %v2084 = vmul.f32 %v2064, %v2080
          %v2085 = vmul.f32 %v2065, %v2076
          %v2086 = vmul.f32 %v2066, %v2080
          %v2087 = vmul.f32 %v2067, %v2076
          %v2088 = vmul.f32 %v2068, %v2080
          %v2089 = vmul.f32 %v2069, %v2076
          %v2090 = vmul.f32 %v2070, %v2080
          %v2091 = vld [vmem:[#allocation11] sm:$0x3]
          %v2093 = vlaneseq
          %v2094 = vshrl.u32 %v2093, 7
          %v2095 = vsub.s32 0, %v2094
          %v2096 = vrot.slane %v2091, %v2095
          %v2097 = vlaneseq
          %v2098 = vshrl.u32 %v2097, 7
          %v2099 = vsub.s32 1, %v2098
          %v2100 = vrot.slane %v2091, %v2099
          %v2103 = vadd.f32 %v2083, %v2096
          %v2104 = vadd.f32 %v2084, %v2100
          %v2105 = vadd.f32 %v2085, %v2096
          %v2106 = vadd.f32 %v2086, %v2100
          %v2107 = vadd.f32 %v2087, %v2096
          %v2108 = vadd.f32 %v2088, %v2100
          %v2109 = vadd.f32 %v2089, %v2096
          %v2110 = vadd.f32 %v2090, %v2100
          %vm2111 = vcmp.gt.f32.partialorder %v2103, 0.0
          %vm2112 = vcmp.gt.f32.partialorder %v2104, 0.0
          %vm2113 = vcmp.gt.f32.partialorder %v2105, 0.0
          %vm2114 = vcmp.gt.f32.partialorder %v2106, 0.0
          %vm2115 = vcmp.gt.f32.partialorder %v2107, 0.0
          %vm2116 = vcmp.gt.f32.partialorder %v2108, 0.0
          %vm2117 = vcmp.gt.f32.partialorder %v2109, 0.0
          %vm2118 = vcmp.gt.f32.partialorder %v2110, 0.0
          %v2119 = vmul.f32 %v2103, 0.2
          %v2120 = vmul.f32 %v2104, 0.2
          %v2121 = vmul.f32 %v2105, 0.2
          %v2122 = vmul.f32 %v2106, 0.2
          %v2123 = vmul.f32 %v2107, 0.2
          %v2124 = vmul.f32 %v2108, 0.2
          %v2125 = vmul.f32 %v2109, 0.2
          %v2126 = vmul.f32 %v2110, 0.2
          %v2127 = vsel %vm2111, %v2103, %v2119
          %v2128 = vsel %vm2112, %v2104, %v2120
          %v2129 = vsel %vm2113, %v2105, %v2121
          %v2130 = vsel %vm2114, %v2106, %v2122
          %v2131 = vsel %vm2115, %v2107, %v2123
          %v2132 = vsel %vm2116, %v2108, %v2124
          %v2133 = vsel %vm2117, %v2109, %v2125
          %v2134 = vsel %vm2118, %v2110, %v2126
          %v2135 = vpack.c.bf16 %v2129, %v2127
          %v2136 = vpack.c.bf16 %v2130, %v2128
          %v2137 = vpack.c.bf16 %v2133, %v2131
          %v2138 = vpack.c.bf16 %v2134, %v2132
          %v2139 = vld [vmem:[#allocation12] sm:$0xff]
          %v2140 = vld [vmem:[#allocation12 + $0x8] sm:$0xff]
          %v2141 = vld [vmem:[#allocation12 + $0x10] sm:$0xff]
          %v2142 = vld [vmem:[#allocation12 + $0x18] sm:$0xff]
          %v2143 = vld [vmem:[#allocation12 + $0x20] sm:$0xff]
          %v2144 = vld [vmem:[#allocation12 + $0x28] sm:$0xff]
          %v2145 = vld [vmem:[#allocation12 + $0x30] sm:$0xff]
          %v2146 = vld [vmem:[#allocation12 + $0x38] sm:$0xff]
          %v2147 = vld [vmem:[#allocation12 + $0x40] sm:$0xff]
          %v2148 = vld [vmem:[#allocation12 + $0x48] sm:$0xff]
          %v2149 = vld [vmem:[#allocation12 + $0x50] sm:$0xff]
          %v2150 = vld [vmem:[#allocation12 + $0x58] sm:$0xff]
          %v2151 = vld [vmem:[#allocation12 + $0x60] sm:$0xff]
          %v2152 = vld [vmem:[#allocation12 + $0x68] sm:$0xff]
          %v2153 = vld [vmem:[#allocation12 + $0x70] sm:$0xff]
          %v2154 = vld [vmem:[#allocation12 + $0x78] sm:$0xff]
          %v2155 = vld [vmem:[#allocation12 + $0x80] sm:$0xff]
          %v2156 = vld [vmem:[#allocation12 + $0x88] sm:$0xff]
          %v2157 = vld [vmem:[#allocation12 + $0x90] sm:$0xff]
          %v2158 = vld [vmem:[#allocation12 + $0x98] sm:$0xff]
          %v2159 = vld [vmem:[#allocation12 + $0xa0] sm:$0xff]
          %v2160 = vld [vmem:[#allocation12 + $0xa8] sm:$0xff]
          %v2161 = vld [vmem:[#allocation12 + $0xb0] sm:$0xff]
          %v2162 = vld [vmem:[#allocation12 + $0xb8] sm:$0xff]
          %v2163 = vld [vmem:[#allocation12 + $0xc0] sm:$0xff]
          %v2164 = vld [vmem:[#allocation12 + $0xc8] sm:$0xff]
          %v2165 = vld [vmem:[#allocation12 + $0xd0] sm:$0xff]
          %v2166 = vld [vmem:[#allocation12 + $0xd8] sm:$0xff]
          %v2167 = vld [vmem:[#allocation12 + $0xe0] sm:$0xff]
          %v2168 = vld [vmem:[#allocation12 + $0xe8] sm:$0xff]
          %v2169 = vld [vmem:[#allocation12 + $0xf0] sm:$0xff]
          %v2170 = vld [vmem:[#allocation12 + $0xf8] sm:$0xff]
          %v2171 = vld [vmem:[#allocation12 + $0x100] sm:$0xff]
          %v2172 = vld [vmem:[#allocation12 + $0x108] sm:$0xff]
          %v2173 = vld [vmem:[#allocation12 + $0x110] sm:$0xff]
          %v2174 = vld [vmem:[#allocation12 + $0x118] sm:$0xff]
          %v2175 = vld [vmem:[#allocation12 + $0x120] sm:$0xff]
          %v2176 = vld [vmem:[#allocation12 + $0x128] sm:$0xff]
          %v2177 = vld [vmem:[#allocation12 + $0x130] sm:$0xff]
          %v2178 = vld [vmem:[#allocation12 + $0x138] sm:$0xff]
          %v2179 = vld [vmem:[#allocation12 + $0x140] sm:$0xff]
          %v2180 = vld [vmem:[#allocation12 + $0x148] sm:$0xff]
          %v2181 = vld [vmem:[#allocation12 + $0x150] sm:$0xff]
          %v2182 = vld [vmem:[#allocation12 + $0x158] sm:$0xff]
          %v2183 = vld [vmem:[#allocation12 + $0x160] sm:$0xff]
          %v2184 = vld [vmem:[#allocation12 + $0x168] sm:$0xff]
          %v2185 = vld [vmem:[#allocation12 + $0x170] sm:$0xff]
          %v2186 = vld [vmem:[#allocation12 + $0x178] sm:$0xff]
          %v2187 = vld [vmem:[#allocation12 + $0x180] sm:$0xff]
          %v2188 = vld [vmem:[#allocation12 + $0x188] sm:$0xff]
          %v2189 = vld [vmem:[#allocation12 + $0x190] sm:$0xff]
          %v2190 = vld [vmem:[#allocation12 + $0x198] sm:$0xff]
          %v2191 = vld [vmem:[#allocation12 + $0x1a0] sm:$0xff]
          %v2192 = vld [vmem:[#allocation12 + $0x1a8] sm:$0xff]
          %v2193 = vld [vmem:[#allocation12 + $0x1b0] sm:$0xff]
          %v2194 = vld [vmem:[#allocation12 + $0x1b8] sm:$0xff]
          %v2195 = vld [vmem:[#allocation12 + $0x1c0] sm:$0xff]
          %v2196 = vld [vmem:[#allocation12 + $0x1c8] sm:$0xff]
          %v2197 = vld [vmem:[#allocation12 + $0x1d0] sm:$0xff]
          %v2198 = vld [vmem:[#allocation12 + $0x1d8] sm:$0xff]
          %v2199 = vld [vmem:[#allocation12 + $0x1e0] sm:$0xff]
          %v2200 = vld [vmem:[#allocation12 + $0x1e8] sm:$0xff]
          %v2201 = vld [vmem:[#allocation12 + $0x1f0] sm:$0xff]
          %v2202 = vld [vmem:[#allocation12 + $0x1f8] sm:$0xff]
          %v2267 = vunpack.c.l.b16 %v2139
          %v2268 = vunpack.c.h.b16 %v2139
          %v2269 = vunpack.c.l.b16 %v2140
          %v2270 = vunpack.c.h.b16 %v2140
          %v2271 = vunpack.c.l.b16 %v2141
          %v2272 = vunpack.c.h.b16 %v2141
          %v2273 = vunpack.c.l.b16 %v2142
          %v2274 = vunpack.c.h.b16 %v2142
          %v2275 = vunpack.c.l.b16 %v2143
          %v2276 = vunpack.c.h.b16 %v2143
          %v2277 = vunpack.c.l.b16 %v2144
          %v2278 = vunpack.c.h.b16 %v2144
          %v2279 = vunpack.c.l.b16 %v2145
          %v2280 = vunpack.c.h.b16 %v2145
          %v2281 = vunpack.c.l.b16 %v2146
          %v2282 = vunpack.c.h.b16 %v2146
          %v2283 = vunpack.c.l.b16 %v2147
          %v2284 = vunpack.c.h.b16 %v2147
          %v2285 = vunpack.c.l.b16 %v2148
          %v2286 = vunpack.c.h.b16 %v2148
          %v2287 = vunpack.c.l.b16 %v2149
          %v2288 = vunpack.c.h.b16 %v2149
          %v2289 = vunpack.c.l.b16 %v2150
          %v2290 = vunpack.c.h.b16 %v2150
          %v2291 = vunpack.c.l.b16 %v2151
          %v2292 = vunpack.c.h.b16 %v2151
          %v2293 = vunpack.c.l.b16 %v2152
          %v2294 = vunpack.c.h.b16 %v2152
          %v2295 = vunpack.c.l.b16 %v2153
          %v2296 = vunpack.c.h.b16 %v2153
          %v2297 = vunpack.c.l.b16 %v2154
          %v2298 = vunpack.c.h.b16 %v2154
          %v2299 = vunpack.c.l.b16 %v2155
          %v2300 = vunpack.c.h.b16 %v2155
          %v2301 = vunpack.c.l.b16 %v2156
          %v2302 = vunpack.c.h.b16 %v2156
          %v2303 = vunpack.c.l.b16 %v2157
          %v2304 = vunpack.c.h.b16 %v2157
          %v2305 = vunpack.c.l.b16 %v2158
          %v2306 = vunpack.c.h.b16 %v2158
          %v2307 = vunpack.c.l.b16 %v2159
          %v2308 = vunpack.c.h.b16 %v2159
          %v2309 = vunpack.c.l.b16 %v2160
          %v2310 = vunpack.c.h.b16 %v2160
          %v2311 = vunpack.c.l.b16 %v2161
          %v2312 = vunpack.c.h.b16 %v2161
          %v2313 = vunpack.c.l.b16 %v2162
          %v2314 = vunpack.c.h.b16 %v2162
          %v2315 = vunpack.c.l.b16 %v2163
          %v2316 = vunpack.c.h.b16 %v2163
          %v2317 = vunpack.c.l.b16 %v2164
          %v2318 = vunpack.c.h.b16 %v2164
          %v2319 = vunpack.c.l.b16 %v2165
          %v2320 = vunpack.c.h.b16 %v2165
          %v2321 = vunpack.c.l.b16 %v2166
          %v2322 = vunpack.c.h.b16 %v2166
          %v2323 = vunpack.c.l.b16 %v2167
          %v2324 = vunpack.c.h.b16 %v2167
          %v2325 = vunpack.c.l.b16 %v2168
          %v2326 = vunpack.c.h.b16 %v2168
          %v2327 = vunpack.c.l.b16 %v2169
          %v2328 = vunpack.c.h.b16 %v2169
          %v2329 = vunpack.c.l.b16 %v2170
          %v2330 = vunpack.c.h.b16 %v2170
          %v2331 = vunpack.c.l.b16 %v2171
          %v2332 = vunpack.c.h.b16 %v2171
          %v2333 = vunpack.c.l.b16 %v2172
          %v2334 = vunpack.c.h.b16 %v2172
          %v2335 = vunpack.c.l.b16 %v2173
          %v2336 = vunpack.c.h.b16 %v2173
          %v2337 = vunpack.c.l.b16 %v2174
          %v2338 = vunpack.c.h.b16 %v2174
          %v2339 = vunpack.c.l.b16 %v2175
          %v2340 = vunpack.c.h.b16 %v2175
          %v2341 = vunpack.c.l.b16 %v2176
          %v2342 = vunpack.c.h.b16 %v2176
          %v2343 = vunpack.c.l.b16 %v2177
          %v2344 = vunpack.c.h.b16 %v2177
          %v2345 = vunpack.c.l.b16 %v2178
          %v2346 = vunpack.c.h.b16 %v2178
          %v2347 = vunpack.c.l.b16 %v2179
          %v2348 = vunpack.c.h.b16 %v2179
          %v2349 = vunpack.c.l.b16 %v2180
          %v2350 = vunpack.c.h.b16 %v2180
          %v2351 = vunpack.c.l.b16 %v2181
          %v2352 = vunpack.c.h.b16 %v2181
          %v2353 = vunpack.c.l.b16 %v2182
          %v2354 = vunpack.c.h.b16 %v2182
          %v2355 = vunpack.c.l.b16 %v2183
          %v2356 = vunpack.c.h.b16 %v2183
          %v2357 = vunpack.c.l.b16 %v2184
          %v2358 = vunpack.c.h.b16 %v2184
          %v2359 = vunpack.c.l.b16 %v2185
          %v2360 = vunpack.c.h.b16 %v2185
          %v2361 = vunpack.c.l.b16 %v2186
          %v2362 = vunpack.c.h.b16 %v2186
          %v2363 = vunpack.c.l.b16 %v2187
          %v2364 = vunpack.c.h.b16 %v2187
          %v2365 = vunpack.c.l.b16 %v2188
          %v2366 = vunpack.c.h.b16 %v2188
          %v2367 = vunpack.c.l.b16 %v2189
          %v2368 = vunpack.c.h.b16 %v2189
          %v2369 = vunpack.c.l.b16 %v2190
          %v2370 = vunpack.c.h.b16 %v2190
          %v2371 = vunpack.c.l.b16 %v2191
          %v2372 = vunpack.c.h.b16 %v2191
          %v2373 = vunpack.c.l.b16 %v2192
          %v2374 = vunpack.c.h.b16 %v2192
          %v2375 = vunpack.c.l.b16 %v2193
          %v2376 = vunpack.c.h.b16 %v2193
          %v2377 = vunpack.c.l.b16 %v2194
          %v2378 = vunpack.c.h.b16 %v2194
          %v2379 = vunpack.c.l.b16 %v2195
          %v2380 = vunpack.c.h.b16 %v2195
          %v2381 = vunpack.c.l.b16 %v2196
          %v2382 = vunpack.c.h.b16 %v2196
          %v2383 = vunpack.c.l.b16 %v2197
          %v2384 = vunpack.c.h.b16 %v2197
          %v2385 = vunpack.c.l.b16 %v2198
          %v2386 = vunpack.c.h.b16 %v2198
          %v2387 = vunpack.c.l.b16 %v2199
          %v2388 = vunpack.c.h.b16 %v2199
          %v2389 = vunpack.c.l.b16 %v2200
          %v2390 = vunpack.c.h.b16 %v2200
          %v2391 = vunpack.c.l.b16 %v2201
          %v2392 = vunpack.c.h.b16 %v2201
          %v2393 = vunpack.c.l.b16 %v2202
          %v2394 = vunpack.c.h.b16 %v2202
          %v2395 = vpack.c.b16 %v2271, %v2267
          %v2396 = vpack.c.b16 %v2272, %v2268
          %v2397 = vpack.c.b16 %v2273, %v2269
          %v2398 = vpack.c.b16 %v2274, %v2270
          %v2399 = vpack.c.b16 %v2279, %v2275
          %v2400 = vpack.c.b16 %v2280, %v2276
          %v2401 = vpack.c.b16 %v2281, %v2277
          %v2402 = vpack.c.b16 %v2282, %v2278
          %v2403 = vpack.c.b16 %v2287, %v2283
          %v2404 = vpack.c.b16 %v2288, %v2284
          %v2405 = vpack.c.b16 %v2289, %v2285
          %v2406 = vpack.c.b16 %v2290, %v2286
          %v2407 = vpack.c.b16 %v2295, %v2291
          %v2408 = vpack.c.b16 %v2296, %v2292
          %v2409 = vpack.c.b16 %v2297, %v2293
          %v2410 = vpack.c.b16 %v2298, %v2294
          %v2411 = vpack.c.b16 %v2303, %v2299
          %v2412 = vpack.c.b16 %v2304, %v2300
          %v2413 = vpack.c.b16 %v2305, %v2301
          %v2414 = vpack.c.b16 %v2306, %v2302
          %v2415 = vpack.c.b16 %v2311, %v2307
          %v2416 = vpack.c.b16 %v2312, %v2308
          %v2417 = vpack.c.b16 %v2313, %v2309
          %v2418 = vpack.c.b16 %v2314, %v2310
          %v2419 = vpack.c.b16 %v2319, %v2315
          %v2420 = vpack.c.b16 %v2320, %v2316
          %v2421 = vpack.c.b16 %v2321, %v2317
          %v2422 = vpack.c.b16 %v2322, %v2318
          %v2423 = vpack.c.b16 %v2327, %v2323
          %v2424 = vpack.c.b16 %v2328, %v2324
          %v2425 = vpack.c.b16 %v2329, %v2325
          %v2426 = vpack.c.b16 %v2330, %v2326
          %v2427 = vpack.c.b16 %v2335, %v2331
          %v2428 = vpack.c.b16 %v2336, %v2332
          %v2429 = vpack.c.b16 %v2337, %v2333
          %v2430 = vpack.c.b16 %v2338, %v2334
          %v2431 = vpack.c.b16 %v2343, %v2339
          %v2432 = vpack.c.b16 %v2344, %v2340
          %v2433 = vpack.c.b16 %v2345, %v2341
          %v2434 = vpack.c.b16 %v2346, %v2342
          %v2435 = vpack.c.b16 %v2351, %v2347
          %v2436 = vpack.c.b16 %v2352, %v2348
          %v2437 = vpack.c.b16 %v2353, %v2349
          %v2438 = vpack.c.b16 %v2354, %v2350
          %v2439 = vpack.c.b16 %v2359, %v2355
          %v2440 = vpack.c.b16 %v2360, %v2356
          %v2441 = vpack.c.b16 %v2361, %v2357
          %v2442 = vpack.c.b16 %v2362, %v2358
          %v2443 = vpack.c.b16 %v2367, %v2363
          %v2444 = vpack.c.b16 %v2368, %v2364
          %v2445 = vpack.c.b16 %v2369, %v2365
          %v2446 = vpack.c.b16 %v2370, %v2366
          %v2447 = vpack.c.b16 %v2375, %v2371
          %v2448 = vpack.c.b16 %v2376, %v2372
          %v2449 = vpack.c.b16 %v2377, %v2373
          %v2450 = vpack.c.b16 %v2378, %v2374
          %v2451 = vpack.c.b16 %v2383, %v2379
          %v2452 = vpack.c.b16 %v2384, %v2380
          %v2453 = vpack.c.b16 %v2385, %v2381
          %v2454 = vpack.c.b16 %v2386, %v2382
          %v2455 = vpack.c.b16 %v2391, %v2387
          %v2456 = vpack.c.b16 %v2392, %v2388
          %v2457 = vpack.c.b16 %v2393, %v2389
          %v2458 = vpack.c.b16 %v2394, %v2390
          %2523 = vmatprep.subr.bf16.mxu0 %v2396
          %2524 = vmatpush1.bf16.msra.mxu0 %v2395
          %2525 = vmatprep.subr.bf16.mxu0 %v2400
          %2526 = vmatpush1.bf16.msra.mxu0 %v2399
          %2527 = vmatprep.subr.bf16.mxu0 %v2404
          %2528 = vmatpush1.bf16.msra.mxu0 %v2403
          %2529 = vmatprep.subr.bf16.mxu0 %v2408
          %2530 = vmatpush1.bf16.msra.mxu0 %v2407
          %2531 = vmatprep.subr.bf16.mxu0 %v2412
          %2532 = vmatpush1.bf16.msra.mxu0 %v2411
          %2533 = vmatprep.subr.bf16.mxu0 %v2416
          %2534 = vmatpush1.bf16.msra.mxu0 %v2415
          %2535 = vmatprep.subr.bf16.mxu0 %v2420
          %2536 = vmatpush1.bf16.msra.mxu0 %v2419
          %2537 = vmatprep.subr.bf16.mxu0 %v2424
          %2538 = vmatpush1.bf16.msra.mxu0 %v2423
          %2539 = vmatprep.subr.bf16.mxu0 %v2428
          %2540 = vmatpush1.bf16.msra.mxu0 %v2427
          %2541 = vmatprep.subr.bf16.mxu0 %v2432
          %2542 = vmatpush1.bf16.msra.mxu0 %v2431
          %2543 = vmatprep.subr.bf16.mxu0 %v2436
          %2544 = vmatpush1.bf16.msra.mxu0 %v2435
          %2545 = vmatprep.subr.bf16.mxu0 %v2440
          %2546 = vmatpush1.bf16.msra.mxu0 %v2439
          %2547 = vmatprep.subr.bf16.mxu0 %v2444
          %2548 = vmatpush1.bf16.msra.mxu0 %v2443
          %2549 = vmatprep.subr.bf16.mxu0 %v2448
          %2550 = vmatpush1.bf16.msra.mxu0 %v2447
          %2551 = vmatprep.subr.bf16.mxu0 %v2452
          %2552 = vmatpush1.bf16.msra.mxu0 %v2451
          %2553 = vmatprep.subr.bf16.mxu0 %v2456
          %2554 = vmatpush1.bf16.msra.mxu0 %v2455
          %2555 = vmatprep.mubr.bf16.mxu0 %v2136
          %2556 = vmatmul.mubr.bf16.gmra.mrb[0].mxu0 %v2135
          %v2557 = vpop.f32.mrb[0].mxu0
          %v2558 = vadd.f32 0.0, %v2557
          %v2559 = vpop.f32.mrb[0].mxu0
          %v2560 = vadd.f32 0.0, %v2559
          %v2561 = vpop.f32.mrb[0].mxu0
          %v2562 = vadd.f32 0.0, %v2561
          %v2563 = vpop.f32.mrb[0].mxu0
          %v2564 = vadd.f32 0.0, %v2563
          %2565 = vmatprep.mubr.bf16.mxu0 %v2138
          %2566 = vmatmul.mubr.bf16.gmra.mrb[0].mxu0 %v2137
          %v2567 = vpop.f32.mrb[0].mxu0
          %v2568 = vadd.f32 0.0, %v2567
          %v2569 = vpop.f32.mrb[0].mxu0
          %v2570 = vadd.f32 0.0, %v2569
          %v2571 = vpop.f32.mrb[0].mxu0
          %v2572 = vadd.f32 0.0, %v2571
          %v2573 = vpop.f32.mrb[0].mxu0
          %v2574 = vadd.f32 0.0, %v2573
          %2575 = vdwg.mxu0
          %2576 = vmatprep.subr.bf16.mxu0 %v2398
          %2577 = vmatpush1.bf16.msra.mxu0 %v2397
          %2578 = vmatprep.subr.bf16.mxu0 %v2402
          %2579 = vmatpush1.bf16.msra.mxu0 %v2401
          %2580 = vmatprep.subr.bf16.mxu0 %v2406
          %2581 = vmatpush1.bf16.msra.mxu0 %v2405
          %2582 = vmatprep.subr.bf16.mxu0 %v2410
          %2583 = vmatpush1.bf16.msra.mxu0 %v2409
          %2584 = vmatprep.subr.bf16.mxu0 %v2414
          %2585 = vmatpush1.bf16.msra.mxu0 %v2413
          %2586 = vmatprep.subr.bf16.mxu0 %v2418
          %2587 = vmatpush1.bf16.msra.mxu0 %v2417
          %2588 = vmatprep.subr.bf16.mxu0 %v2422
          %2589 = vmatpush1.bf16.msra.mxu0 %v2421
          %2590 = vmatprep.subr.bf16.mxu0 %v2426
          %2591 = vmatpush1.bf16.msra.mxu0 %v2425
          %2592 = vmatprep.subr.bf16.mxu0 %v2430
          %2593 = vmatpush1.bf16.msra.mxu0 %v2429
          %2594 = vmatprep.subr.bf16.mxu0 %v2434
          %2595 = vmatpush1.bf16.msra.mxu0 %v2433
          %2596 = vmatprep.subr.bf16.mxu0 %v2438
          %2597 = vmatpush1.bf16.msra.mxu0 %v2437
          %2598 = vmatprep.subr.bf16.mxu0 %v2442
          %2599 = vmatpush1.bf16.msra.mxu0 %v2441
          %2600 = vmatprep.subr.bf16.mxu0 %v2446
          %2601 = vmatpush1.bf16.msra.mxu0 %v2445
          %2602 = vmatprep.subr.bf16.mxu0 %v2450
          %2603 = vmatpush1.bf16.msra.mxu0 %v2449
          %2604 = vmatprep.subr.bf16.mxu0 %v2454
          %2605 = vmatpush1.bf16.msra.mxu0 %v2453
          %2606 = vmatprep.subr.bf16.mxu0 %v2458
          %2607 = vmatpush1.bf16.msra.mxu0 %v2457
          %2608 = vmatprep.mubr.bf16.mxu0 %v2136
          %2609 = vmatmul.mubr.bf16.gmra.mrb[0].mxu0 %v2135
          %v2610 = vpop.f32.mrb[0].mxu0
          %v2611 = vadd.f32 0.0, %v2610
          %v2612 = vpop.f32.mrb[0].mxu0
          %v2613 = vadd.f32 0.0, %v2612
          %v2614 = vpop.f32.mrb[0].mxu0
          %v2615 = vadd.f32 0.0, %v2614
          %v2616 = vpop.f32.mrb[0].mxu0
          %v2617 = vadd.f32 0.0, %v2616
          %2618 = vmatprep.mubr.bf16.mxu0 %v2138
          %2619 = vmatmul.mubr.bf16.gmra.mrb[0].mxu0 %v2137
          %v2620 = vpop.f32.mrb[0].mxu0
          %v2621 = vadd.f32 0.0, %v2620
          %v2622 = vpop.f32.mrb[0].mxu0
          %v2623 = vadd.f32 0.0, %v2622
          %v2624 = vpop.f32.mrb[0].mxu0
          %v2625 = vadd.f32 0.0, %v2624
          %v2626 = vpop.f32.mrb[0].mxu0
          %v2627 = vadd.f32 0.0, %v2626
          %2628 = vdwg.mxu0
          %v2629 = vld [vmem:[#allocation4] sm:$0xf]
          %v2630 = vmul.f32 %v2629, 0.0125
          %v2631 = vld [vmem:[#allocation5] sm:$0xf]
          %v2632 = vmul.f32 %v2631, 0.0125
          %v2633 = vmul.f32 %v2630, %v2630
          %v2634 = vsub.f32 %v2632, %v2633
          %v2635 = vmax.f32 %v2634, 0.0
          %v2636 = vadd.f32 %v2635, 1e-05
          %v2637 = vrsqrt.pop %v2636
          %v2639 = vlaneseq
          %v2640 = vshrl.u32 %v2639, 7
          %v2641 = vsub.s32 0, %v2640
          %v2642 = vrot.slane %v2630, %v2641
          %v2643 = vlaneseq
          %v2644 = vshrl.u32 %v2643, 7
          %v2645 = vsub.s32 1, %v2644
          %v2646 = vrot.slane %v2630, %v2645
          %v2647 = vlaneseq
          %v2648 = vshrl.u32 %v2647, 7
          %v2649 = vsub.s32 2, %v2648
          %v2650 = vrot.slane %v2630, %v2649
          %v2651 = vlaneseq
          %v2652 = vshrl.u32 %v2651, 7
          %v2653 = vsub.s32 3, %v2652
          %v2654 = vrot.slane %v2630, %v2653
          %v2659 = vsub.f32 %v2558, %v2642
          %v2660 = vsub.f32 %v2560, %v2646
          %v2661 = vsub.f32 %v2611, %v2650
          %v2662 = vsub.f32 %v2613, %v2654
          %v2663 = vsub.f32 %v2562, %v2642
          %v2664 = vsub.f32 %v2564, %v2646
          %v2665 = vsub.f32 %v2615, %v2650
          %v2666 = vsub.f32 %v2617, %v2654
          %v2667 = vsub.f32 %v2568, %v2642
          %v2668 = vsub.f32 %v2570, %v2646
          %v2669 = vsub.f32 %v2621, %v2650
          %v2670 = vsub.f32 %v2623, %v2654
          %v2671 = vsub.f32 %v2572, %v2642
          %v2672 = vsub.f32 %v2574, %v2646
          %v2673 = vsub.f32 %v2625, %v2650
          %v2674 = vsub.f32 %v2627, %v2654
          %v2676 = vlaneseq
          %v2677 = vshrl.u32 %v2676, 7
          %v2678 = vsub.s32 0, %v2677
          %v2679 = vrot.slane %v2637, %v2678
          %v2680 = vlaneseq
          %v2681 = vshrl.u32 %v2680, 7
          %v2682 = vsub.s32 1, %v2681
          %v2683 = vrot.slane %v2637, %v2682
          %v2684 = vlaneseq
          %v2685 = vshrl.u32 %v2684, 7
          %v2686 = vsub.s32 2, %v2685
          %v2687 = vrot.slane %v2637, %v2686
          %v2688 = vlaneseq
          %v2689 = vshrl.u32 %v2688, 7
          %v2690 = vsub.s32 3, %v2689
          %v2691 = vrot.slane %v2637, %v2690
          %v2696 = vmul.f32 %v2659, %v2679
          %v2697 = vmul.f32 %v2660, %v2683
          %v2698 = vmul.f32 %v2661, %v2687
          %v2699 = vmul.f32 %v2662, %v2691
          %v2700 = vmul.f32 %v2663, %v2679
          %v2701 = vmul.f32 %v2664, %v2683
          %v2702 = vmul.f32 %v2665, %v2687
          %v2703 = vmul.f32 %v2666, %v2691
          %v2704 = vmul.f32 %v2667, %v2679
          %v2705 = vmul.f32 %v2668, %v2683
          %v2706 = vmul.f32 %v2669, %v2687
          %v2707 = vmul.f32 %v2670, %v2691
          %v2708 = vmul.f32 %v2671, %v2679
          %v2709 = vmul.f32 %v2672, %v2683
          %v2710 = vmul.f32 %v2673, %v2687
          %v2711 = vmul.f32 %v2674, %v2691
          %v2712 = vld [vmem:[%s5] sm:$0xf]
          %v2714 = vlaneseq
          %v2715 = vshrl.u32 %v2714, 7
          %v2716 = vsub.s32 0, %v2715
          %v2717 = vrot.slane %v2712, %v2716
          %v2718 = vlaneseq
          %v2719 = vshrl.u32 %v2718, 7
          %v2720 = vsub.s32 1, %v2719
          %v2721 = vrot.slane %v2712, %v2720
          %v2722 = vlaneseq
          %v2723 = vshrl.u32 %v2722, 7
          %v2724 = vsub.s32 2, %v2723
          %v2725 = vrot.slane %v2712, %v2724
          %v2726 = vlaneseq
          %v2727 = vshrl.u32 %v2726, 7
          %v2728 = vsub.s32 3, %v2727
          %v2729 = vrot.slane %v2712, %v2728
          %v2734 = vmul.f32 %v2696, %v2717
          %v2735 = vmul.f32 %v2697, %v2721
          %v2736 = vmul.f32 %v2698, %v2725
          %v2737 = vmul.f32 %v2699, %v2729
          %v2738 = vmul.f32 %v2700, %v2717
          %v2739 = vmul.f32 %v2701, %v2721
          %v2740 = vmul.f32 %v2702, %v2725
          %v2741 = vmul.f32 %v2703, %v2729
          %v2742 = vmul.f32 %v2704, %v2717
          %v2743 = vmul.f32 %v2705, %v2721
          %v2744 = vmul.f32 %v2706, %v2725
          %v2745 = vmul.f32 %v2707, %v2729
          %v2746 = vmul.f32 %v2708, %v2717
          %v2747 = vmul.f32 %v2709, %v2721
          %v2748 = vmul.f32 %v2710, %v2725
          %v2749 = vmul.f32 %v2711, %v2729
          %v2750 = vld [vmem:[%s6] sm:$0xf]
          %v2752 = vlaneseq
          %v2753 = vshrl.u32 %v2752, 7
          %v2754 = vsub.s32 0, %v2753
          %v2755 = vrot.slane %v2750, %v2754
          %v2756 = vlaneseq
          %v2757 = vshrl.u32 %v2756, 7
          %v2758 = vsub.s32 1, %v2757
          %v2759 = vrot.slane %v2750, %v2758
          %v2760 = vlaneseq
          %v2761 = vshrl.u32 %v2760, 7
          %v2762 = vsub.s32 2, %v2761
          %v2763 = vrot.slane %v2750, %v2762
          %v2764 = vlaneseq
          %v2765 = vshrl.u32 %v2764, 7
          %v2766 = vsub.s32 3, %v2765
          %v2767 = vrot.slane %v2750, %v2766
          %v2772 = vadd.f32 %v2734, %v2755
          %v2773 = vadd.f32 %v2735, %v2759
          %v2774 = vadd.f32 %v2736, %v2763
          %v2775 = vadd.f32 %v2737, %v2767
          %v2776 = vadd.f32 %v2738, %v2755
          %v2777 = vadd.f32 %v2739, %v2759
          %v2778 = vadd.f32 %v2740, %v2763
          %v2779 = vadd.f32 %v2741, %v2767
          %v2780 = vadd.f32 %v2742, %v2755
          %v2781 = vadd.f32 %v2743, %v2759
          %v2782 = vadd.f32 %v2744, %v2763
          %v2783 = vadd.f32 %v2745, %v2767
          %v2784 = vadd.f32 %v2746, %v2755
          %v2785 = vadd.f32 %v2747, %v2759
          %v2786 = vadd.f32 %v2748, %v2763
          %v2787 = vadd.f32 %v2749, %v2767
          %vm2788 = vcmp.gt.f32.partialorder %v2772, 0.0
          %vm2789 = vcmp.gt.f32.partialorder %v2773, 0.0
          %vm2790 = vcmp.gt.f32.partialorder %v2774, 0.0
          %vm2791 = vcmp.gt.f32.partialorder %v2775, 0.0
          %vm2792 = vcmp.gt.f32.partialorder %v2776, 0.0
          %vm2793 = vcmp.gt.f32.partialorder %v2777, 0.0
          %vm2794 = vcmp.gt.f32.partialorder %v2778, 0.0
          %vm2795 = vcmp.gt.f32.partialorder %v2779, 0.0
          %vm2796 = vcmp.gt.f32.partialorder %v2780, 0.0
          %vm2797 = vcmp.gt.f32.partialorder %v2781, 0.0
          %vm2798 = vcmp.gt.f32.partialorder %v2782, 0.0
          %vm2799 = vcmp.gt.f32.partialorder %v2783, 0.0
          %vm2800 = vcmp.gt.f32.partialorder %v2784, 0.0
          %vm2801 = vcmp.gt.f32.partialorder %v2785, 0.0
          %vm2802 = vcmp.gt.f32.partialorder %v2786, 0.0
          %vm2803 = vcmp.gt.f32.partialorder %v2787, 0.0
          %v2804 = vmul.f32 %v2772, 0.2
          %v2805 = vmul.f32 %v2773, 0.2
          %v2806 = vmul.f32 %v2774, 0.2
          %v2807 = vmul.f32 %v2775, 0.2
          %v2808 = vmul.f32 %v2776, 0.2
          %v2809 = vmul.f32 %v2777, 0.2
          %v2810 = vmul.f32 %v2778, 0.2
          %v2811 = vmul.f32 %v2779, 0.2
          %v2812 = vmul.f32 %v2780, 0.2
          %v2813 = vmul.f32 %v2781, 0.2
          %v2814 = vmul.f32 %v2782, 0.2
          %v2815 = vmul.f32 %v2783, 0.2
          %v2816 = vmul.f32 %v2784, 0.2
          %v2817 = vmul.f32 %v2785, 0.2
          %v2818 = vmul.f32 %v2786, 0.2
          %v2819 = vmul.f32 %v2787, 0.2
          %v2820 = vsel %vm2788, %v2772, %v2804
          %v2821 = vsel %vm2789, %v2773, %v2805
          %v2822 = vsel %vm2790, %v2774, %v2806
          %v2823 = vsel %vm2791, %v2775, %v2807
          %v2824 = vsel %vm2792, %v2776, %v2808
          %v2825 = vsel %vm2793, %v2777, %v2809
          %v2826 = vsel %vm2794, %v2778, %v2810
          %v2827 = vsel %vm2795, %v2779, %v2811
          %v2828 = vsel %vm2796, %v2780, %v2812
          %v2829 = vsel %vm2797, %v2781, %v2813
          %v2830 = vsel %vm2798, %v2782, %v2814
          %v2831 = vsel %vm2799, %v2783, %v2815
          %v2832 = vsel %vm2800, %v2784, %v2816
          %v2833 = vsel %vm2801, %v2785, %v2817
          %v2834 = vsel %vm2802, %v2786, %v2818
          %v2835 = vsel %vm2803, %v2787, %v2819
          %v2836 = vld [vmem:[%s7] sm:$0xf]
          %v2838 = vlaneseq
          %v2839 = vshrl.u32 %v2838, 7
          %v2840 = vsub.s32 0, %v2839
          %v2841 = vrot.slane %v2836, %v2840
          %v2842 = vlaneseq
          %v2843 = vshrl.u32 %v2842, 7
          %v2844 = vsub.s32 1, %v2843
          %v2845 = vrot.slane %v2836, %v2844
          %v2846 = vlaneseq
          %v2847 = vshrl.u32 %v2846, 7
          %v2848 = vsub.s32 2, %v2847
          %v2849 = vrot.slane %v2836, %v2848
          %v2850 = vlaneseq
          %v2851 = vshrl.u32 %v2850, 7
          %v2852 = vsub.s32 3, %v2851
          %v2853 = vrot.slane %v2836, %v2852
          %v2858 = vmul.f32 %v2820, %v2841
          %v2859 = vmul.f32 %v2821, %v2845
          %v2860 = vmul.f32 %v2822, %v2849
          %v2861 = vmul.f32 %v2823, %v2853
          %v2862 = vmul.f32 %v2824, %v2841
          %v2863 = vmul.f32 %v2825, %v2845
          %v2864 = vmul.f32 %v2826, %v2849
          %v2865 = vmul.f32 %v2827, %v2853
          %v2866 = vmul.f32 %v2828, %v2841
          %v2867 = vmul.f32 %v2829, %v2845
          %v2868 = vmul.f32 %v2830, %v2849
          %v2869 = vmul.f32 %v2831, %v2853
          %v2870 = vmul.f32 %v2832, %v2841
          %v2871 = vmul.f32 %v2833, %v2845
          %v2872 = vmul.f32 %v2834, %v2849
          %v2873 = vmul.f32 %v2835, %v2853
          %v2874 = vadd.f32 %v2858, %v2859
          %v2875 = vadd.f32 %v2874, %v2860
          %v2876 = vadd.f32 %v2875, %v2861
          %2877 = vadd.xlane.f32.xlu0 %v2876
          %v2878 = vpop.xlane.xlu0 %2877
          %v2879 = vadd.f32 %v2862, %v2863
          %v2880 = vadd.f32 %v2879, %v2864
          %v2881 = vadd.f32 %v2880, %v2865
          %2882 = vadd.xlane.f32.xlu0 %v2881
          %v2883 = vpop.xlane.xlu0 %2882
          %v2884 = vadd.f32 %v2866, %v2867
          %v2885 = vadd.f32 %v2884, %v2868
          %v2886 = vadd.f32 %v2885, %v2869
          %2887 = vadd.xlane.f32.xlu0 %v2886
          %v2888 = vpop.xlane.xlu0 %2887
          %v2889 = vadd.f32 %v2870, %v2871
          %v2890 = vadd.f32 %v2889, %v2872
          %v2891 = vadd.f32 %v2890, %v2873
          %2892 = vadd.xlane.f32.xlu0 %v2891
          %v2893 = vpop.xlane.xlu0 %2892
          %v2894 = vld [vmem:[#allocation6] sm:$0x1]
          %v2896 = vlaneseq
          %v2897 = vshrl.u32 %v2896, 7
          %v2898 = vsub.s32 0, %v2897
          %v2899 = vrot.slane %v2894, %v2898
          %v2901 = vadd.f32 %v2878, %v2899
          %v2902 = vadd.f32 %v2883, %v2899
          %v2903 = vadd.f32 %v2888, %v2899
          %v2904 = vadd.f32 %v2893, %v2899
          %vm2905 = vcmask 7168
          %2906 = vst.msk [vmem:[%s410] sm:$0xff] %vm2905, %v2901
          %2907 = vst.msk [vmem:[%s410 + $0x8] sm:$0xff] %vm2905, %v2902
          %2908 = vst.msk [vmem:[%s410 + $0x10] sm:$0xff] %vm2905, %v2903
          %2909 = vst.msk [vmem:[%s410 + $0x18] sm:$0xff] %vm2905, %v2904
        $region92: #{tpu_custom_call.1} parent=55 // pred_fallthru
          _
        %s2910 = smul.u32 4, %s32
        %p2911 = scmp.lt.s32.totalorder %s2910, 11
        %s2912 = scalar_select %p2911, %s2910, 11
        %s2913 = smul.addr %s2912, 8
        %s2914 = scalar_lea.vmem %s9, %s2913
        // Predicated region
        $region93: #{tpu_custom_call.1} parent=55 // pred_check
          %p2915 = pneg %p251
        $region94: #{tpu_custom_call.1} parent=55 // pred_check_branch
          %2917 = sbr.rel (%p2915) target = $region96
        $region95: #{tpu_custom_call.1} parent=55 // pred_region
          %s2918 = smul.u32 4, %s32
        $region96: #{tpu_custom_call.1} parent=55 // pred_fallthru
          _
      $region56: #{tpu_custom_call.1} parent=5 // pred_fallthru
        _
      %p2919 = scmp.le.s32.totalorder 2, %s22
      // Predicated region
      $region97: #{tpu_custom_call.1} parent=5 // pred_check
        %p2920 = pneg %p2919
      $region98: #{tpu_custom_call.1} parent=5 // pred_check_branch
        %2922 = sbr.rel (%p2920) target = $region100
      $region99: #{tpu_custom_call.1} parent=5 // pred_region
        %s2923 = ssub.s32 %s22, 2
        // Predicated region
        $region101: #{tpu_custom_call.1} parent=99 // pred_check
          %p2924 = pneg %p257
        $region102: #{tpu_custom_call.1} parent=99 // pred_check_branch
          %2926 = sbr.rel (%p2924) target = $region104
        $region103: #{tpu_custom_call.1} parent=99 // pred_region
          %s2927 = smul.u32 4, %s34
          %p2928 = scmp.lt.s32.totalorder %s2927, 11
          %s2929 = scalar_select %p2928, %s2927, 11
          %s2930 = smul.addr %s2929, 8
          %s2931 = scalar_lea.vmem %s9, %s2930
        $region104: #{tpu_custom_call.1} parent=99 // pred_fallthru
          _
      $region100: #{tpu_custom_call.1} parent=5 // pred_fallthru
        _
    $region6: #{tpu_custom_call.1} parent=1 // loop_footer
      %s26 = sadd.s32 1, %s22
    $region7: #{tpu_custom_call.1} parent=1 // loop_footer_branch
      %21 = sbr.rel target = $region3
    $region8: #{tpu_custom_call.1} parent=1 // loop_exit
      _
    %2932 = vsyncpa [#allocation8], 1
    %s2933 = scalar_lea.sflag [#allocation8], 1
    %2934 = vsyncpa %s2933, 1
    %2935 = vsyncpa [#allocation10], 1
    %2936 = vsyncpa [#allocation13], 1

</llo_original>
